<compile_context>
chip_gen: v7x
topology: tpu7x:2x2x1
jax: 0.10.0
libtpu: 0.0.40
codegen_flags: <defaults>
</compile_context>

<pallas_src>
import functools
import math

import jax
import jax.numpy as jnp
from jax.experimental import pallas as pl
from jax.experimental.pallas import tpu as pltpu

LANE = 128


def _round_up(x, m):
    return (x + m - 1) // m * m


def _vmem_limit(block_bytes, intermediate_bytes=0):
    """Scoped-VMEM request computed from actual buffer sizes: pipeline blocks
    are double-buffered, plus an allowance for in-kernel intermediates and
    compiler scratch, clamped well under v7x's 64 MiB-per-TensorCore VMEM."""
    want = 2 * block_bytes + intermediate_bytes + (2 << 20)
    return int(min(max(want, 8 << 20), 48 << 20))


def _decoder_tile(vocab):
    """Lane-dense vocab column tile: 256-wide feeds the v6e/v7x 256-wide MXU;
    128 (still lane-aligned, fine on v5e) for tiny vocabularies."""
    tn = 256 if _round_up(vocab, LANE) >= 256 else 128
    return tn, _round_up(vocab, tn)


# ----------------------------------------------------------------------------
# Shared math — used both inside the Pallas kernels and by the pure-JAX
# reference so the two paths are numerically identical (modulo approx recip).
# ----------------------------------------------------------------------------
def _layer_norm(x, w, b, eps=1e-5):
    mu = jnp.mean(x, axis=-1, keepdims=True)
    var = jnp.mean(jnp.square(x - mu), axis=-1, keepdims=True)
    return (x - mu) * jax.lax.rsqrt(var + eps) * w + b


def _causal_mask(seq):
    """Additive causal mask built from iota (no [S,S] input tensor / DMA)."""
    row = jax.lax.broadcasted_iota(jnp.int32, (seq, seq), 0)
    col = jax.lax.broadcasted_iota(jnp.int32, (seq, seq), 1)
    return jnp.where(col <= row, 0.0, -1e9).astype(jnp.float32)


def _encoder_layer(x, mask, w, *, n_heads, batch, seq, use_pl_reciprocal):
    """One TransformerEncoderLayer (post-norm, ReLU); dropout == identity.

    x: [S*B, E] f32, seq-major rows.  Weight matrices are [in, out] bf16;
    biases / LayerNorm params are [1, dim] f32.
    """
    (w_qkv, b_qkv, w_out, b_out, w1, b1, w2, b2,
     ln1_w, ln1_b, ln2_w, ln2_b) = w
    E = x.shape[-1]
    hd = E // n_heads
    bh = batch * n_heads
    scale = 1.0 / math.sqrt(hd)

    def recip(v):
        # approx=True uses the EUP slot (essentially free); ~1e-3 rel. error vs
        # exact division — deliberate, documented divergence from PyTorch.
        return pl.reciprocal(v, approx=True) if use_pl_reciprocal else 1.0 / v

    # ---- fused QKV projection: one MXU pass instead of three ---------------
    xb = x.astype(jnp.bfloat16)
    qkv = jnp.dot(xb, w_qkv, preferred_element_type=jnp.float32) + b_qkv  # [S*B,3E]
    # [S*B, 3E] -> [B, 3H, S, hd]: single reshape + single transpose; q/k/v
    # then come out as cheap leading-dim slices (removes 2 of the 4 per-layer
    # layout shuffles of the naive formulation).
    qkv = jnp.transpose(qkv.reshape(seq, batch, 3 * n_heads, hd), (1, 2, 0, 3))
    qh = qkv[:, :n_heads].reshape(bh, seq, hd).astype(jnp.bfloat16)
    kh = qkv[:, n_heads:2 * n_heads].reshape(bh, seq, hd).astype(jnp.bfloat16)
    vh = qkv[:, 2 * n_heads:].reshape(bh, seq, hd).astype(jnp.bfloat16)

    # ---- scaled dot-product attention (full scores; fine for small S) ------
    # TODO(synk): KV-tiled online softmax (flash-style) once S >~ 256.
    sc = jnp.einsum('bqd,bkd->bqk', qh, kh,
                    preferred_element_type=jnp.float32) * scale + mask
    m = jnp.max(sc, axis=-1, keepdims=True)
    p = jnp.exp(sc - m)
    denom = jnp.sum(p, axis=-1, keepdims=True)
    ctx = jnp.einsum('bqk,bkd->bqd', p.astype(jnp.bfloat16), vh,
                     preferred_element_type=jnp.float32)
    ctx = ctx * recip(denom)                 # fold normalization after PV matmul
    # [B*H, S, hd] -> [S*B, E]: the single remaining inverse transpose per layer.
    ctx = jnp.transpose(ctx.reshape(batch, n_heads, seq, hd),
                        (2, 0, 1, 3)).reshape(seq * batch, E)

    attn = jnp.dot(ctx.astype(jnp.bfloat16), w_out,
                   preferred_element_type=jnp.float32) + b_out
    x = _layer_norm(x + attn, ln1_w, ln1_b)

    # ---- feed forward (ReLU) ------------------------------------------------
    h = jnp.dot(x.astype(jnp.bfloat16), w1,
                preferred_element_type=jnp.float32) + b1
    h = jnp.maximum(h, 0.0)
    ff = jnp.dot(h.astype(jnp.bfloat16), w2,
                 preferred_element_type=jnp.float32) + b2
    return _layer_norm(x + ff, ln2_w, ln2_b)


# ----------------------------------------------------------------------------
# Pallas kernels
# ----------------------------------------------------------------------------
def _encoder_kernel(x_ref, pe_ref,
                    wqkv_ref, bqkv_ref, wo_ref, bo_ref,
                    w1_ref, b1_ref, w2_ref, b2_ref,
                    ln1w_ref, ln1b_ref, ln2w_ref, ln2b_ref,
                    out_ref, x_sc,
                    *, n_heads, batch, seq, embed):
    """Grid axis 0 = layer index ('arbitrary'). x_sc persists across layers."""
    l = pl.program_id(0)

    @pl.when(l == 0)
    def _():
        # src = embedding(src) * sqrt(E); src = pos_encoder(src)  (dropout = id)
        x_sc[...] = x_ref[...] * math.sqrt(embed) + pe_ref[...]

    mask = _causal_mask(seq)
    # Only the CURRENT layer's weights are loaded (streamed by the BlockSpecs).
    layer_w = (wqkv_ref[...], bqkv_ref[...], wo_ref[...], bo_ref[...],
               w1_ref[...], b1_ref[...], w2_ref[...], b2_ref[...],
               ln1w_ref[...], ln1b_ref[...], ln2w_ref[...], ln2b_ref[...])
    x_sc[...] = _encoder_layer(x_sc[...], mask, layer_w,
                               n_heads=n_heads, batch=batch, seq=seq,
                               use_pl_reciprocal=True)

    @pl.when(l == pl.num_programs(0) - 1)
    def _():
        out_ref[...] = x_sc[...]


def _decoder_kernel(x_ref, w_ref, b_ref, out_ref):
    """One lane-dense vocab-column tile of logits = x @ dec_w + dec_b."""
    out_ref[...] = (jnp.dot(x_ref[...].astype(jnp.bfloat16), w_ref[...],
                            preferred_element_type=jnp.float32)
                    + b_ref[...]).astype(out_ref.dtype)


# ----------------------------------------------------------------------------
# pallas_call wrappers
# ----------------------------------------------------------------------------
def _per_layer_spec(*tail):
    nz = (0,) * len(tail)
    return pl.BlockSpec((None, *tail), lambda l: (l, *nz))


def _encoder_pallas(x2, pe2, enc_params, *, n_heads, n_layers, batch, seq):
    SB, E = x2.shape
    hidden = enc_params[4].shape[-1]          # w1: [L, E, hidden]
    bh = batch * n_heads
    hd = E // n_heads

    in_specs = [
        pl.BlockSpec((SB, E), lambda l: (0, 0)),      # x2   (resident)
        pl.BlockSpec((SB, E), lambda l: (0, 0)),      # pe2  (resident)
        _per_layer_spec(E, 3 * E),                    # w_qkv
        _per_layer_spec(1, 3 * E),                    # b_qkv
        _per_layer_spec(E, E),                        # w_out
        _per_layer_spec(1, E),                        # b_out
        _per_layer_spec(E, hidden),                   # w1
        _per_layer_spec(1, hidden),                   # b1
        _per_layer_spec(hidden, E),                   # w2
        _per_layer_spec(1, E),                        # b2
        _per_layer_spec(1, E), _per_layer_spec(1, E),  # ln1 w/b
        _per_layer_spec(1, E), _per_layer_spec(1, E),  # ln2 w/b
    ]
    out_spec = pl.BlockSpec((SB, E), lambda l: (0, 0))

    # Per-grid-step pipeline block bytes (for the scoped-VMEM request).
    block_bytes = (4 * SB * E * 4                                    # x2+pe2+out+scratch
                   + 2 * (E * 3 * E + E * E + 2 * E * hidden)        # bf16 weights
                   + 4 * (2 * 3 * E + 2 * hidden + 8 * E))           # f32 biases/LN
    inter_bytes = 4 * (3 * bh * seq * seq + 4 * SB * 3 * E
                       + 2 * SB * hidden + 8 * SB * E)

    flops = n_layers * (2 * SB * E * 3 * E + 4 * bh * seq * seq * hd
                        + 2 * SB * E * E + 4 * SB * E * hidden)
    transc = n_layers * (bh * seq * seq + bh * seq + 2 * SB)
    bytes_accessed = int(3 * SB * E * 4
                         + sum(int(p.size) * p.dtype.itemsize for p in enc_params))

    kernel = functools.partial(_encoder_kernel, n_heads=n_heads, batch=batch,
                               seq=seq, embed=E)
    return pl.pallas_call(
        kernel,
        grid=(n_layers,),
        in_specs=in_specs,
        out_specs=out_spec,
        out_shape=jax.ShapeDtypeStruct((SB, E), jnp.float32),
        scratch_shapes=[pltpu.VMEM((SB, E), jnp.float32)],
        compiler_params=pltpu.CompilerParams(
            dimension_semantics=("arbitrary",),       # layer axis is sequential
            vmem_limit_bytes=_vmem_limit(block_bytes, inter_bytes)),
        cost_estimate=pl.CostEstimate(flops=int(flops),
                                      transcendentals=int(transc),
                                      bytes_accessed=bytes_accessed),
    )(x2, pe2, *enc_params)


def _decoder_pallas(x_enc, dec_w, dec_b, *, tile_n, logits_dtype=jnp.float32):
    SB, E = x_enc.shape
    Vpad = dec_w.shape[-1]
    out_isz = jnp.dtype(logits_dtype).itemsize

    block_bytes = SB * E * 4 + E * tile_n * 2 + tile_n * 4 + SB * tile_n * out_isz
    flops = 2 * SB * E * Vpad
    bytes_accessed = int(SB * E * 4 + int(dec_w.size) * 2 + int(dec_b.size) * 4
                         + SB * Vpad * out_isz)

    return pl.pallas_call(
        _decoder_kernel,
        grid=(Vpad // tile_n,),
        in_specs=[pl.BlockSpec((SB, E), lambda j: (0, 0)),
                  pl.BlockSpec((E, tile_n), lambda j: (0, j)),
                  pl.BlockSpec((1, tile_n), lambda j: (0, j))],
        out_specs=pl.BlockSpec((SB, tile_n), lambda j: (0, j)),
        out_shape=jax.ShapeDtypeStruct((SB, Vpad), logits_dtype),
        compiler_params=pltpu.CompilerParams(
            dimension_semantics=("parallel",),        # megacore-shardable on v7x
            vmem_limit_bytes=_vmem_limit(block_bytes)),
        cost_estimate=pl.CostEstimate(flops=int(flops), transcendentals=0,
                                      bytes_accessed=bytes_accessed),
    )(x_enc, dec_w, dec_b)


# ----------------------------------------------------------------------------
# Glue: positional-encoding table, parameters, full forward.
# ----------------------------------------------------------------------------
def positional_encoding(max_len, d_model):
    assert d_model % 2 == 0, "positional encoding assumes even embed dim"
    pos = jnp.arange(max_len, dtype=jnp.float32)[:, None]
    div = jnp.exp(jnp.arange(0, d_model, 2, dtype=jnp.float32)
                  * (-jnp.log(10000.0) / d_model))
    pe = jnp.zeros((max_len, d_model), jnp.float32)
    pe = pe.at[:, 0::2].set(jnp.sin(pos * div))
    pe = pe.at[:, 1::2].set(jnp.cos(pos * div))
    return pe


def init_params(key, vocab_size, embed, n_heads, hidden, n_layers):
    """Deterministic synthetic parameters.  Linear weights stored pre-transposed
    as [in, out] (transpose of PyTorch's [out, in])."""
    ks = jax.random.split(key, 14)
    u = lambda k, shape, a: jax.random.uniform(k, shape, jnp.float32, -a, a)
    se = 1.0 / math.sqrt(embed)
    sh = 1.0 / math.sqrt(hidden)

    emb_w = u(ks[0], (vocab_size, embed), 0.1)             # nn.Embedding weight
    wq = u(ks[1], (n_layers, embed, embed), se)            # in_proj q/k/v
    wk = u(ks[2], (n_layers, embed, embed), se)
    wv = u(ks[3], (n_layers, embed, embed), se)
    bq = u(ks[4], (n_layers, 1, embed), se)
    bk = u(ks[5], (n_layers, 1, embed), se)
    bv = u(ks[6], (n_layers, 1, embed), se)
    w_out = u(ks[7], (n_layers, embed, embed), se)         # attn out_proj
    b_out = u(ks[8], (n_layers, 1, embed), se)
    w1 = u(ks[9], (n_layers, embed, hidden), se)           # linear1
    b1 = u(ks[10], (n_layers, 1, hidden), se)
    w2 = u(ks[11], (n_layers, hidden, embed), sh)          # linear2
    b2 = u(ks[12], (n_layers, 1, embed), sh)
    ln1_w = jnp.ones((n_layers, 1, embed), jnp.float32)
    ln1_b = jnp.zeros((n_layers, 1, embed), jnp.float32)
    ln2_w = jnp.ones((n_layers, 1, embed), jnp.float32)
    ln2_b = jnp.zeros((n_layers, 1, embed), jnp.float32)
    dec_w = u(ks[13], (embed, vocab_size), 0.1)            # decoder Linear
    dec_b = jnp.zeros((1, vocab_size), jnp.float32)        # zeroed bias

    return emb_w, (wq, bq, wk, bk, wv, bv, w_out, b_out, w1, b1, w2, b2,
                   ln1_w, ln1_b, ln2_w, ln2_b, dec_w, dec_b)


def _prepare_kernel_params(layer_params, v_pad):
    """bf16-cast MXU weights, fuse QKV (columns [q|k|v]), pad decoder to v_pad."""
    (wq, bq, wk, bk, wv, bv, w_out, b_out, w1, b1, w2, b2,
     ln1_w, ln1_b, ln2_w, ln2_b, dec_w, dec_b) = layer_params
    bf = lambda w: w.astype(jnp.bfloat16)
    w_qkv = bf(jnp.concatenate([wq, wk, wv], axis=-1))      # [L, E, 3E]
    b_qkv = jnp.concatenate([bq, bk, bv], axis=-1)          # [L, 1, 3E]
    pad = v_pad - dec_w.shape[-1]
    dec_w_p = bf(jnp.pad(dec_w, ((0, 0), (0, pad))))
    dec_b_p = jnp.pad(dec_b, ((0, 0), (0, pad)))
    enc = (w_qkv, b_qkv, bf(w_out), b_out, bf(w1), b1, bf(w2), b2,
           ln1_w, ln1_b, ln2_w, ln2_b)
    return enc, (dec_w_p, dec_b_p)


def _prepare_inputs(src, emb_w):
    """Embedding gather + seq-major flattening + PE slab (host-side JAX)."""
    S, B = src.shape
    _, E = emb_w.shape
    x2 = jnp.take(emb_w, src, axis=0).reshape(S * B, E)          # row = s*B + b
    pe2 = jnp.broadcast_to(positional_encoding(S, E)[:, None, :],
                           (S, B, E)).reshape(S * B, E)
    return x2, pe2


def transformer_model_forward(src, emb_w, layer_params, *, n_heads, n_layers):
    """src: [S, B] int32 tokens (PyTorch convention).  Returns [S, B, vocab]."""
    S, B = src.shape
    V, E = emb_w.shape
    tn, v_pad = _decoder_tile(V)

    x2, pe2 = _prepare_inputs(src, emb_w)
    enc_params, (dec_w, dec_b) = _prepare_kernel_params(layer_params, v_pad)

    x_enc = _encoder_pallas(x2, pe2, enc_params, n_heads=n_heads,
                            n_layers=n_layers, batch=B, seq=S)
    logits2 = _decoder_pallas(x_enc, dec_w, dec_b, tile_n=tn,
                              logits_dtype=jnp.float32)
    # Rows are seq-major: reshape straight to [S, B, Vpad], drop vocab padding.
    return logits2.reshape(S, B, v_pad)[:, :, :V]


# ----------------------------------------------------------------------------
# Pure-JAX reference (identical math, exact reciprocal).
# ----------------------------------------------------------------------------
def _transformer_ref(x2, pe2, enc_params, dec_w, dec_b, *, n_heads, n_layers,
                     batch, seq):
    E = x2.shape[-1]
    x = x2 * math.sqrt(E) + pe2
    mask = _causal_mask(seq)
    for l in range(n_layers):
        layer_w = tuple(p[l] for p in enc_params)
        x = _encoder_layer(x, mask, layer_w, n_heads=n_heads, batch=batch,
                           seq=seq, use_pl_reciprocal=False)
    return jnp.dot(x.astype(jnp.bfloat16), dec_w,
                   preferred_element_type=jnp.float32) + dec_b


# ----------------------------------------------------------------------------
if __name__ == "__main__":
    VOCAB, EMBED, N_HEADS, HIDDEN, N_LAYERS = 100, 32, 2, 64, 2
    SEQ, BATCH = 8, 2

    key = jax.random.PRNGKey(0)
    k_param, k_tok = jax.random.split(key)
    emb_w, params = init_params(k_param, VOCAB, EMBED, N_HEADS, HIDDEN, N_LAYERS)
    src = jax.random.randint(k_tok, (SEQ, BATCH), 0, VOCAB, dtype=jnp.int32)

    out = transformer_model_forward(src, emb_w, params,
                                    n_heads=N_HEADS, n_layers=N_LAYERS)
    out = jax.block_until_ready(out)
    assert out.shape == (SEQ, BATCH, VOCAB)

    # Reference check (same bf16 matmuls; exact reciprocal instead of approx).
    _, VPAD = _decoder_tile(VOCAB)
    x2_r, pe2_r = _prepare_inputs(src, emb_w)
    enc_r, (dec_w_r, dec_b_r) = _prepare_kernel_params(params, VPAD)
    ref2 = _transformer_ref(x2_r, pe2_r, enc_r, dec_w_r, dec_b_r,
                            n_heads=N_HEADS, n_layers=N_LAYERS,
                            batch=BATCH, seq=SEQ)
    ref = ref2.reshape(SEQ, BATCH, VPAD)[:, :, :VOCAB]

    max_err = float(jnp.max(jnp.abs(out - ref)))
    assert bool(jnp.allclose(out, ref, atol=2e-2, rtol=2e-2)), (
        f"kernel/reference mismatch, max abs err = {max_err}")

    print("KERNEL_OK")
</pallas_src>

<mosaic_0001>
module attributes {stable_mosaic.version = 11 : i64} {
  func.func @_encoder_kernel(%arg0: i32, %arg1: memref<16x32xf32, #tpu.memory_space<vmem>>, %arg2: memref<16x32xf32, #tpu.memory_space<vmem>>, %arg3: memref<1x32x96xbf16, #tpu.memory_space<vmem>>, %arg4: memref<1x1x96xf32, #tpu.memory_space<vmem>>, %arg5: memref<1x32x32xbf16, #tpu.memory_space<vmem>>, %arg6: memref<1x1x32xf32, #tpu.memory_space<vmem>>, %arg7: memref<1x32x64xbf16, #tpu.memory_space<vmem>>, %arg8: memref<1x1x64xf32, #tpu.memory_space<vmem>>, %arg9: memref<1x64x32xbf16, #tpu.memory_space<vmem>>, %arg10: memref<1x1x32xf32, #tpu.memory_space<vmem>>, %arg11: memref<1x1x32xf32, #tpu.memory_space<vmem>>, %arg12: memref<1x1x32xf32, #tpu.memory_space<vmem>>, %arg13: memref<1x1x32xf32, #tpu.memory_space<vmem>>, %arg14: memref<1x1x32xf32, #tpu.memory_space<vmem>>, %arg15: memref<16x32xf32, #tpu.memory_space<vmem>>, %arg16: memref<16x32xf32, #tpu.memory_space<vmem>>) attributes {dimension_semantics = [#tpu.dimension_semantics<arbitrary>], iteration_bounds = array<i64: 2>, scalar_prefetch = 0 : i64, scratch_operands = 1 : i64, tpu.core_type = #tpu.core_type<tc>, window_params = [{pipeline_mode = #tpu.pipeline_mode<synchronous>, transform_indices = @transform_0, window_bounds = array<i64: 16, 32>}, {pipeline_mode = #tpu.pipeline_mode<synchronous>, transform_indices = @transform_1, window_bounds = array<i64: 16, 32>}, {transform_indices = @transform_2, window_bounds = array<i64: 1, 32, 96>}, {transform_indices = @transform_3, window_bounds = array<i64: 1, 1, 96>}, {transform_indices = @transform_4, window_bounds = array<i64: 1, 32, 32>}, {transform_indices = @transform_5, window_bounds = array<i64: 1, 1, 32>}, {transform_indices = @transform_6, window_bounds = array<i64: 1, 32, 64>}, {transform_indices = @transform_7, window_bounds = array<i64: 1, 1, 64>}, {transform_indices = @transform_8, window_bounds = array<i64: 1, 64, 32>}, {transform_indices = @transform_9, window_bounds = array<i64: 1, 1, 32>}, {transform_indices = @transform_10, window_bounds = array<i64: 1, 1, 32>}, {transform_indices = @transform_11, window_bounds = array<i64: 1, 1, 32>}, {transform_indices = @transform_12, window_bounds = array<i64: 1, 1, 32>}, {transform_indices = @transform_13, window_bounds = array<i64: 1, 1, 32>}, {pipeline_mode = #tpu.pipeline_mode<synchronous>, transform_indices = @transform_14, window_bounds = array<i64: 16, 32>}]} {
    %c0_i32 = arith.constant 0 : i32
    %0 = arith.cmpi eq, %arg0, %c0_i32 : i32
    %1 = arith.extui %0 : i1 to i32
    %c0_i32_0 = arith.constant 0 : i32
    %2 = arith.cmpi ne, %1, %c0_i32_0 : i32
    scf.if %2 {
      %c0_62 = arith.constant 0 : index
      %c0_63 = arith.constant 0 : index
      %134 = vector.load %arg1[%c0_62, %c0_63] : memref<16x32xf32, #tpu.memory_space<vmem>>, vector<16x32xf32>
      %cst_64 = arith.constant 5.65685415 : f32
      %135 = vector.broadcast %cst_64 : f32 to vector<16x32xf32>
      %136 = arith.mulf %134, %135 : vector<16x32xf32>
      %c0_65 = arith.constant 0 : index
      %c0_66 = arith.constant 0 : index
      %137 = vector.load %arg2[%c0_65, %c0_66] : memref<16x32xf32, #tpu.memory_space<vmem>>, vector<16x32xf32>
      %138 = arith.addf %136, %137 : vector<16x32xf32>
      %c0_67 = arith.constant 0 : index
      %c0_68 = arith.constant 0 : index
      %139 = vector.load %arg16[%c0_67, %c0_68] : memref<16x32xf32, #tpu.memory_space<vmem>>, vector<16x32xf32>
      tpu.vector_store %arg16[%c0_67, %c0_68], %138 {strides = array<i32>} : memref<16x32xf32, #tpu.memory_space<vmem>>, vector<16x32xf32>,
    } else {
    }
    %3 = tpu.iota {dimensions = array<i32: 0>} : vector<8x8xi32>
    %4 = tpu.iota {dimensions = array<i32: 1>} : vector<8x8xi32>
    %5 = arith.cmpi sle, %4, %3 : vector<8x8xi32>
    %cst = arith.constant 0.000000e+00 : f32
    %cst_1 = arith.constant -1.000000e+09 : f32
    %6 = vector.broadcast %cst : f32 to vector<8x8xf32>
    %7 = vector.broadcast %cst_1 : f32 to vector<8x8xf32>
    %8 = arith.select %5, %6, %7 : vector<8x8xi1>, vector<8x8xf32>
    %c0 = arith.constant 0 : index
    %c0_2 = arith.constant 0 : index
    %c0_3 = arith.constant 0 : index
    %9 = vector.load %arg3[%c0, %c0_2, %c0_3] : memref<1x32x96xbf16, #tpu.memory_space<vmem>>, vector<1x32x96xbf16>
    %10 = vector.shape_cast %9 : vector<1x32x96xbf16> to vector<32x96xbf16>
    %c0_4 = arith.constant 0 : index
    %c0_5 = arith.constant 0 : index
    %c0_6 = arith.constant 0 : index
    %11 = vector.load %arg4[%c0_4, %c0_5, %c0_6] : memref<1x1x96xf32, #tpu.memory_space<vmem>>, vector<1x1x96xf32>
    %12 = vector.shape_cast %11 : vector<1x1x96xf32> to vector<1x96xf32>
    %c0_7 = arith.constant 0 : index
    %c0_8 = arith.constant 0 : index
    %c0_9 = arith.constant 0 : index
    %13 = vector.load %arg5[%c0_7, %c0_8, %c0_9] : memref<1x32x32xbf16, #tpu.memory_space<vmem>>, vector<1x32x32xbf16>
    %14 = vector.shape_cast %13 : vector<1x32x32xbf16> to vector<32x32xbf16>
    %c0_10 = arith.constant 0 : index
    %c0_11 = arith.constant 0 : index
    %c0_12 = arith.constant 0 : index
    %15 = vector.load %arg6[%c0_10, %c0_11, %c0_12] : memref<1x1x32xf32, #tpu.memory_space<vmem>>, vector<1x1x32xf32>
    %16 = vector.shape_cast %15 : vector<1x1x32xf32> to vector<1x32xf32>
    %c0_13 = arith.constant 0 : index
    %c0_14 = arith.constant 0 : index
    %c0_15 = arith.constant 0 : index
    %17 = vector.load %arg7[%c0_13, %c0_14, %c0_15] : memref<1x32x64xbf16, #tpu.memory_space<vmem>>, vector<1x32x64xbf16>
    %18 = vector.shape_cast %17 : vector<1x32x64xbf16> to vector<32x64xbf16>
    %c0_16 = arith.constant 0 : index
    %c0_17 = arith.constant 0 : index
    %c0_18 = arith.constant 0 : index
    %19 = vector.load %arg8[%c0_16, %c0_17, %c0_18] : memref<1x1x64xf32, #tpu.memory_space<vmem>>, vector<1x1x64xf32>
    %20 = vector.shape_cast %19 : vector<1x1x64xf32> to vector<1x64xf32>
    %c0_19 = arith.constant 0 : index
    %c0_20 = arith.constant 0 : index
    %c0_21 = arith.constant 0 : index
    %21 = vector.load %arg9[%c0_19, %c0_20, %c0_21] : memref<1x64x32xbf16, #tpu.memory_space<vmem>>, vector<1x64x32xbf16>
    %22 = vector.shape_cast %21 : vector<1x64x32xbf16> to vector<64x32xbf16>
    %c0_22 = arith.constant 0 : index
    %c0_23 = arith.constant 0 : index
    %c0_24 = arith.constant 0 : index
    %23 = vector.load %arg10[%c0_22, %c0_23, %c0_24] : memref<1x1x32xf32, #tpu.memory_space<vmem>>, vector<1x1x32xf32>
    %24 = vector.shape_cast %23 : vector<1x1x32xf32> to vector<1x32xf32>
    %c0_25 = arith.constant 0 : index
    %c0_26 = arith.constant 0 : index
    %c0_27 = arith.constant 0 : index
    %25 = vector.load %arg11[%c0_25, %c0_26, %c0_27] : memref<1x1x32xf32, #tpu.memory_space<vmem>>, vector<1x1x32xf32>
    %26 = vector.shape_cast %25 : vector<1x1x32xf32> to vector<1x32xf32>
    %c0_28 = arith.constant 0 : index
    %c0_29 = arith.constant 0 : index
    %c0_30 = arith.constant 0 : index
    %27 = vector.load %arg12[%c0_28, %c0_29, %c0_30] : memref<1x1x32xf32, #tpu.memory_space<vmem>>, vector<1x1x32xf32>
    %28 = vector.shape_cast %27 : vector<1x1x32xf32> to vector<1x32xf32>
    %c0_31 = arith.constant 0 : index
    %c0_32 = arith.constant 0 : index
    %c0_33 = arith.constant 0 : index
    %29 = vector.load %arg13[%c0_31, %c0_32, %c0_33] : memref<1x1x32xf32, #tpu.memory_space<vmem>>, vector<1x1x32xf32>
    %30 = vector.shape_cast %29 : vector<1x1x32xf32> to vector<1x32xf32>
    %c0_34 = arith.constant 0 : index
    %c0_35 = arith.constant 0 : index
    %c0_36 = arith.constant 0 : index
    %31 = vector.load %arg14[%c0_34, %c0_35, %c0_36] : memref<1x1x32xf32, #tpu.memory_space<vmem>>, vector<1x1x32xf32>
    %32 = vector.shape_cast %31 : vector<1x1x32xf32> to vector<1x32xf32>
    %c0_37 = arith.constant 0 : index
    %c0_38 = arith.constant 0 : index
    %33 = vector.load %arg16[%c0_37, %c0_38] : memref<16x32xf32, #tpu.memory_space<vmem>>, vector<16x32xf32>
    %34 = arith.truncf %33 : vector<16x32xf32> to vector<16x32xbf16>
    %cst_39 = arith.constant dense<0.000000e+00> : vector<16x96xf32>
    %35 = tpu.matmul %34, %10, %cst_39 {dimension_numbers = #tpu.dot_dimension_numbers<[1], [0], [0], [1], [0, 0, 1, 1], [], []>} : vector<16x32xbf16>, vector<32x96xbf16>, vector<16x96xf32> -> vector<16x96xf32>
    %36 = vector.broadcast %12 : vector<1x96xf32> to vector<16x96xf32>
    %37 = arith.addf %35, %36 : vector<16x96xf32>
    %38 = vector.shape_cast %37 : vector<16x96xf32> to vector<8x2x6x16xf32>
    %39 = tpu.transpose %38, [1, 2, 0, 3] : vector<8x2x6x16xf32> -> vector<2x6x8x16xf32>
    %40 = vector.extract_strided_slice %39 {offsets = [0, 0, 0, 0], sizes = [2, 2, 8, 16], strides = [1, 1, 1, 1]} : vector<2x6x8x16xf32> to vector<2x2x8x16xf32>
    %41 = vector.shape_cast %40 : vector<2x2x8x16xf32> to vector<4x8x16xf32>
    %42 = arith.truncf %41 : vector<4x8x16xf32> to vector<4x8x16xbf16>
    %43 = vector.extract_strided_slice %39 {offsets = [0, 2, 0, 0], sizes = [2, 2, 8, 16], strides = [1, 1, 1, 1]} : vector<2x6x8x16xf32> to vector<2x2x8x16xf32>
    %44 = vector.shape_cast %43 : vector<2x2x8x16xf32> to vector<4x8x16xf32>
    %45 = arith.truncf %44 : vector<4x8x16xf32> to vector<4x8x16xbf16>
    %46 = vector.extract_strided_slice %39 {offsets = [0, 4, 0, 0], sizes = [2, 2, 8, 16], strides = [1, 1, 1, 1]} : vector<2x6x8x16xf32> to vector<2x2x8x16xf32>
    %47 = vector.shape_cast %46 : vector<2x2x8x16xf32> to vector<4x8x16xf32>
    %48 = arith.truncf %47 : vector<4x8x16xf32> to vector<4x8x16xbf16>
    "tpu.trace_start"() <{level = 10 : i32, message = "bqd,bkd->bqk"}> : () -> ()
    %cst_40 = arith.constant dense<0.000000e+00> : vector<4x8x8xf32>
    %49 = tpu.matmul %42, %45, %cst_40 {dimension_numbers = #tpu.dot_dimension_numbers<[2], [2], [1], [1], [0, 0, 0, 1, 1, 1], [0], [0]>} : vector<4x8x16xbf16>, vector<4x8x16xbf16>, vector<4x8x8xf32> -> vector<4x8x8xf32>
    "tpu.trace_stop"() : () -> ()
    %cst_41 = arith.constant 2.500000e-01 : f32
    %50 = vector.broadcast %cst_41 : f32 to vector<4x8x8xf32>
    %51 = arith.mulf %49, %50 : vector<4x8x8xf32>
    %52 = vector.shape_cast %8 : vector<8x8xf32> to vector<1x8x8xf32>
    %53 = vector.broadcast %52 : vector<1x8x8xf32> to vector<4x8x8xf32>
    %54 = arith.addf %51, %53 : vector<4x8x8xf32>
    %cst_42 = arith.constant dense<0xFF800000> : vector<4x8xf32>
    %55 = vector.multi_reduction <maximumf>, %54, %cst_42 [2] : vector<4x8x8xf32> to vector<4x8xf32>
    %56 = vector.shape_cast %55 : vector<4x8xf32> to vector<4x8x1xf32>
    %57 = vector.broadcast %56 : vector<4x8x1xf32> to vector<4x8x8xf32>
    %58 = arith.subf %54, %57 : vector<4x8x8xf32>
    %59 = math.exp %58 : vector<4x8x8xf32>
    %cst_43 = arith.constant dense<0.000000e+00> : vector<4x8xf32>
    %60 = vector.multi_reduction <add>, %59, %cst_43 [2] : vector<4x8x8xf32> to vector<4x8xf32>
    %61 = vector.shape_cast %60 : vector<4x8xf32> to vector<4x8x1xf32>
    %62 = arith.truncf %59 : vector<4x8x8xf32> to vector<4x8x8xbf16>
    "tpu.trace_start"() <{level = 10 : i32, message = "bqk,bkd->bqd"}> : () -> ()
    %cst_44 = arith.constant dense<0.000000e+00> : vector<4x8x16xf32>
    %63 = tpu.matmul %62, %48, %cst_44 {dimension_numbers = #tpu.dot_dimension_numbers<[2], [1], [1], [2], [0, 0, 0, 1, 1, 2], [0], [0]>} : vector<4x8x8xbf16>, vector<4x8x16xbf16>, vector<4x8x16xf32> -> vector<4x8x16xf32>
    "tpu.trace_stop"() : () -> ()
    %64 = tpu.reciprocal %61 {approx = true} : vector<4x8x1xf32> -> vector<4x8x1xf32>
    %65 = vector.broadcast %64 : vector<4x8x1xf32> to vector<4x8x16xf32>
    %66 = arith.mulf %63, %65 : vector<4x8x16xf32>
    %67 = vector.shape_cast %66 : vector<4x8x16xf32> to vector<2x2x8x16xf32>
    %68 = tpu.transpose %67, [2, 0, 1, 3] : vector<2x2x8x16xf32> -> vector<8x2x2x16xf32>
    %69 = vector.shape_cast %68 : vector<8x2x2x16xf32> to vector<16x32xf32>
    %70 = arith.truncf %69 : vector<16x32xf32> to vector<16x32xbf16>
    %cst_45 = arith.constant dense<0.000000e+00> : vector<16x32xf32>
    %71 = tpu.matmul %70, %14, %cst_45 {dimension_numbers = #tpu.dot_dimension_numbers<[1], [0], [0], [1], [0, 0, 1, 1], [], []>} : vector<16x32xbf16>, vector<32x32xbf16>, vector<16x32xf32> -> vector<16x32xf32>
    %72 = vector.broadcast %16 : vector<1x32xf32> to vector<16x32xf32>
    %73 = arith.addf %71, %72 : vector<16x32xf32>
    %74 = arith.addf %33, %73 : vector<16x32xf32>
    %cst_46 = arith.constant dense<0.000000e+00> : vector<16xf32>
    %75 = vector.multi_reduction <add>, %74, %cst_46 [1] : vector<16x32xf32> to vector<16xf32>
    %76 = vector.shape_cast %75 : vector<16xf32> to vector<16x1xf32>
    %cst_47 = arith.constant 3.200000e+01 : f32
    %77 = vector.broadcast %cst_47 : f32 to vector<16x1xf32>
    %78 = arith.divf %76, %77 : vector<16x1xf32>
    %79 = vector.broadcast %78 : vector<16x1xf32> to vector<16x32xf32>
    %80 = arith.subf %74, %79 : vector<16x32xf32>
    %81 = arith.mulf %80, %80 : vector<16x32xf32>
    %cst_48 = arith.constant dense<0.000000e+00> : vector<16xf32>
    %82 = vector.multi_reduction <add>, %81, %cst_48 [1] : vector<16x32xf32> to vector<16xf32>
    %83 = vector.shape_cast %82 : vector<16xf32> to vector<16x1xf32>
    %cst_49 = arith.constant 3.200000e+01 : f32
    %84 = vector.broadcast %cst_49 : f32 to vector<16x1xf32>
    %85 = arith.divf %83, %84 : vector<16x1xf32>
    %86 = vector.broadcast %78 : vector<16x1xf32> to vector<16x32xf32>
    %87 = arith.subf %74, %86 : vector<16x32xf32>
    %cst_50 = arith.constant 9.99999974E-6 : f32
    %88 = vector.broadcast %cst_50 : f32 to vector<16x1xf32>
    %89 = arith.addf %85, %88 : vector<16x1xf32>
    %90 = math.rsqrt %89 : vector<16x1xf32>
    %91 = vector.broadcast %90 : vector<16x1xf32> to vector<16x32xf32>
    %92 = arith.mulf %87, %91 : vector<16x32xf32>
    %93 = vector.broadcast %26 : vector<1x32xf32> to vector<16x32xf32>
    %94 = arith.mulf %92, %93 : vector<16x32xf32>
    %95 = vector.broadcast %28 : vector<1x32xf32> to vector<16x32xf32>
    %96 = arith.addf %94, %95 : vector<16x32xf32>
    %97 = arith.truncf %96 : vector<16x32xf32> to vector<16x32xbf16>
    %cst_51 = arith.constant dense<0.000000e+00> : vector<16x64xf32>
    %98 = tpu.matmul %97, %18, %cst_51 {dimension_numbers = #tpu.dot_dimension_numbers<[1], [0], [0], [1], [0, 0, 1, 1], [], []>} : vector<16x32xbf16>, vector<32x64xbf16>, vector<16x64xf32> -> vector<16x64xf32>
    %99 = vector.broadcast %20 : vector<1x64xf32> to vector<16x64xf32>
    %100 = arith.addf %98, %99 : vector<16x64xf32>
    %cst_52 = arith.constant 0.000000e+00 : f32
    %101 = vector.broadcast %cst_52 : f32 to vector<16x64xf32>
    %102 = arith.maximumf %100, %101 : vector<16x64xf32>
    %103 = arith.truncf %102 : vector<16x64xf32> to vector<16x64xbf16>
    %cst_53 = arith.constant dense<0.000000e+00> : vector<16x32xf32>
    %104 = tpu.matmul %103, %22, %cst_53 {dimension_numbers = #tpu.dot_dimension_numbers<[1], [0], [0], [1], [0, 0, 1, 1], [], []>} : vector<16x64xbf16>, vector<64x32xbf16>, vector<16x32xf32> -> vector<16x32xf32>
    %105 = vector.broadcast %24 : vector<1x32xf32> to vector<16x32xf32>
    %106 = arith.addf %104, %105 : vector<16x32xf32>
    %107 = arith.addf %96, %106 : vector<16x32xf32>
    %cst_54 = arith.constant dense<0.000000e+00> : vector<16xf32>
    %108 = vector.multi_reduction <add>, %107, %cst_54 [1] : vector<16x32xf32> to vector<16xf32>
    %109 = vector.shape_cast %108 : vector<16xf32> to vector<16x1xf32>
    %cst_55 = arith.constant 3.200000e+01 : f32
    %110 = vector.broadcast %cst_55 : f32 to vector<16x1xf32>
    %111 = arith.divf %109, %110 : vector<16x1xf32>
    %112 = vector.broadcast %111 : vector<16x1xf32> to vector<16x32xf32>
    %113 = arith.subf %107, %112 : vector<16x32xf32>
    %114 = arith.mulf %113, %113 : vector<16x32xf32>
    %cst_56 = arith.constant dense<0.000000e+00> : vector<16xf32>
    %115 = vector.multi_reduction <add>, %114, %cst_56 [1] : vector<16x32xf32> to vector<16xf32>
    %116 = vector.shape_cast %115 : vector<16xf32> to vector<16x1xf32>
    %cst_57 = arith.constant 3.200000e+01 : f32
    %117 = vector.broadcast %cst_57 : f32 to vector<16x1xf32>
    %118 = arith.divf %116, %117 : vector<16x1xf32>
    %119 = vector.broadcast %111 : vector<16x1xf32> to vector<16x32xf32>
    %120 = arith.subf %107, %119 : vector<16x32xf32>
    %cst_58 = arith.constant 9.99999974E-6 : f32
    %121 = vector.broadcast %cst_58 : f32 to vector<16x1xf32>
    %122 = arith.addf %118, %121 : vector<16x1xf32>
    %123 = math.rsqrt %122 : vector<16x1xf32>
    %124 = vector.broadcast %123 : vector<16x1xf32> to vector<16x32xf32>
    %125 = arith.mulf %120, %124 : vector<16x32xf32>
    %126 = vector.broadcast %30 : vector<1x32xf32> to vector<16x32xf32>
    %127 = arith.mulf %125, %126 : vector<16x32xf32>
    %128 = vector.broadcast %32 : vector<1x32xf32> to vector<16x32xf32>
    %129 = arith.addf %127, %128 : vector<16x32xf32>
    %c0_59 = arith.constant 0 : index
    %c0_60 = arith.constant 0 : index
    %130 = vector.load %arg16[%c0_59, %c0_60] : memref<16x32xf32, #tpu.memory_space<vmem>>, vector<16x32xf32>
    tpu.vector_store %arg16[%c0_59, %c0_60], %129 {strides = array<i32>} : memref<16x32xf32, #tpu.memory_space<vmem>>, vector<16x32xf32>,
    %c1_i32 = arith.constant 1 : i32
    %131 = arith.cmpi eq, %arg0, %c1_i32 : i32
    %132 = arith.extui %131 : i1 to i32
    %c0_i32_61 = arith.constant 0 : i32
    %133 = arith.cmpi ne, %132, %c0_i32_61 : i32
    scf.if %133 {
      %c0_62 = arith.constant 0 : index
      %c0_63 = arith.constant 0 : index
      %134 = vector.load %arg16[%c0_62, %c0_63] : memref<16x32xf32, #tpu.memory_space<vmem>>, vector<16x32xf32>
      %c0_64 = arith.constant 0 : index
      %c0_65 = arith.constant 0 : index
      %135 = vector.load %arg15[%c0_64, %c0_65] : memref<16x32xf32, #tpu.memory_space<vmem>>, vector<16x32xf32>
      tpu.vector_store %arg15[%c0_64, %c0_65], %134 {strides = array<i32>} : memref<16x32xf32, #tpu.memory_space<vmem>>, vector<16x32xf32>,
    } else {
    }
    return
  }
  func.func @transform_0(%arg0: i32) -> (i32, i32) {
    %c0_i32 = arith.constant 0 : i32
    %c0_i32_0 = arith.constant 0 : i32
    %c0_i32_1 = arith.constant 0 : i32
    return %c0_i32, %c0_i32_0 : i32, i32
  }
  func.func @transform_1(%arg0: i32) -> (i32, i32) {
    %c0_i32 = arith.constant 0 : i32
    %c0_i32_0 = arith.constant 0 : i32
    %c0_i32_1 = arith.constant 0 : i32
    return %c0_i32, %c0_i32_0 : i32, i32
  }
  func.func @transform_2(%arg0: i32) -> (i32, i32, i32) {
    %c0_i32 = arith.constant 0 : i32
    %c0_i32_0 = arith.constant 0 : i32
    %c0_i32_1 = arith.constant 0 : i32
    return %arg0, %c0_i32, %c0_i32_0 : i32, i32, i32
  }
  func.func @transform_3(%arg0: i32) -> (i32, i32, i32) {
    %c0_i32 = arith.constant 0 : i32
    %c0_i32_0 = arith.constant 0 : i32
    %c0_i32_1 = arith.constant 0 : i32
    return %arg0, %c0_i32, %c0_i32_0 : i32, i32, i32
  }
  func.func @transform_4(%arg0: i32) -> (i32, i32, i32) {
    %c0_i32 = arith.constant 0 : i32
    %c0_i32_0 = arith.constant 0 : i32
    %c0_i32_1 = arith.constant 0 : i32
    return %arg0, %c0_i32, %c0_i32_0 : i32, i32, i32
  }
  func.func @transform_5(%arg0: i32) -> (i32, i32, i32) {
    %c0_i32 = arith.constant 0 : i32
    %c0_i32_0 = arith.constant 0 : i32
    %c0_i32_1 = arith.constant 0 : i32
    return %arg0, %c0_i32, %c0_i32_0 : i32, i32, i32
  }
  func.func @transform_6(%arg0: i32) -> (i32, i32, i32) {
    %c0_i32 = arith.constant 0 : i32
    %c0_i32_0 = arith.constant 0 : i32
    %c0_i32_1 = arith.constant 0 : i32
    return %arg0, %c0_i32, %c0_i32_0 : i32, i32, i32
  }
  func.func @transform_7(%arg0: i32) -> (i32, i32, i32) {
    %c0_i32 = arith.constant 0 : i32
    %c0_i32_0 = arith.constant 0 : i32
    %c0_i32_1 = arith.constant 0 : i32
    return %arg0, %c0_i32, %c0_i32_0 : i32, i32, i32
  }
  func.func @transform_8(%arg0: i32) -> (i32, i32, i32) {
    %c0_i32 = arith.constant 0 : i32
    %c0_i32_0 = arith.constant 0 : i32
    %c0_i32_1 = arith.constant 0 : i32
    return %arg0, %c0_i32, %c0_i32_0 : i32, i32, i32
  }
  func.func @transform_9(%arg0: i32) -> (i32, i32, i32) {
    %c0_i32 = arith.constant 0 : i32
    %c0_i32_0 = arith.constant 0 : i32
    %c0_i32_1 = arith.constant 0 : i32
    return %arg0, %c0_i32, %c0_i32_0 : i32, i32, i32
  }
  func.func @transform_10(%arg0: i32) -> (i32, i32, i32) {
    %c0_i32 = arith.constant 0 : i32
    %c0_i32_0 = arith.constant 0 : i32
    %c0_i32_1 = arith.constant 0 : i32
    return %arg0, %c0_i32, %c0_i32_0 : i32, i32, i32
  }
  func.func @transform_11(%arg0: i32) -> (i32, i32, i32) {
    %c0_i32 = arith.constant 0 : i32
    %c0_i32_0 = arith.constant 0 : i32
    %c0_i32_1 = arith.constant 0 : i32
    return %arg0, %c0_i32, %c0_i32_0 : i32, i32, i32
  }
  func.func @transform_12(%arg0: i32) -> (i32, i32, i32) {
    %c0_i32 = arith.constant 0 : i32
    %c0_i32_0 = arith.constant 0 : i32
    %c0_i32_1 = arith.constant 0 : i32
    return %arg0, %c0_i32, %c0_i32_0 : i32, i32, i32
  }
  func.func @transform_13(%arg0: i32) -> (i32, i32, i32) {
    %c0_i32 = arith.constant 0 : i32
    %c0_i32_0 = arith.constant 0 : i32
    %c0_i32_1 = arith.constant 0 : i32
    return %arg0, %c0_i32, %c0_i32_0 : i32, i32, i32
  }
  func.func @transform_14(%arg0: i32) -> (i32, i32) {
    %c0_i32 = arith.constant 0 : i32
    %c0_i32_0 = arith.constant 0 : i32
    %c0_i32_1 = arith.constant 0 : i32
    return %c0_i32, %c0_i32_0 : i32, i32
  }
}

</mosaic_0001>

<llo_original>
// kernel: tpu_custom_call.1
$region0: #{tpu_custom_call.1}
  #allocation0 [shape = 'u32[]', space=smem, size = 0x4, offset = 0x4, fixed_abs, tag = 'smem constant byte address 0x4 - core index']
  #allocation1 [shape = 'u32[144,128]{1,0:T(1,128)}', space=vmem, size = 0x12000, scoped, tag = 'internal scratch']
  #allocation2 [shape = 'f32[16,32]{1,0:T(8,128)}', space=vmem, size = 0x2000, scoped, tag = 'scratch operand']
  %s0 = inlined_call_operand.hbm [shape: f32[16,32], index: 0, kind: input, shape index: {}]
  %s1 = inlined_call_operand.hbm [shape: f32[16,32], index: 1, kind: input, shape index: {}]
  %s2 = inlined_call_operand.vmem [shape: bf16[2,32,96], index: 2, kind: input, shape index: {}]
  %s3 = inlined_call_operand.vmem [shape: f32[2,1,96], index: 3, kind: input, shape index: {}]
  %s4 = inlined_call_operand.vmem [shape: bf16[2,32,32], index: 4, kind: input, shape index: {}]
  %s5 = inlined_call_operand.vmem [shape: f32[2,1,32], index: 5, kind: input, shape index: {}]
  %s6 = inlined_call_operand.vmem [shape: bf16[2,32,64], index: 6, kind: input, shape index: {}]
  %s7 = inlined_call_operand.vmem [shape: f32[2,1,64], index: 7, kind: input, shape index: {}]
  %s8 = inlined_call_operand.vmem [shape: bf16[2,64,32], index: 8, kind: input, shape index: {}]
  %s9 = inlined_call_operand.vmem [shape: f32[2,1,32], index: 9, kind: input, shape index: {}]
  %s10 = inlined_call_operand.vmem [shape: f32[2,1,32], index: 10, kind: input, shape index: {}]
  %s11 = inlined_call_operand.vmem [shape: f32[2,1,32], index: 11, kind: input, shape index: {}]
  %s12 = inlined_call_operand.vmem [shape: f32[2,1,32], index: 12, kind: input, shape index: {}]
  %s13 = inlined_call_operand.vmem [shape: f32[2,1,32], index: 13, kind: input, shape index: {}]
  %s14 = inlined_call_operand.hbm [shape: f32[16,32], index: 14, kind: output, shape index: {}]
  %s15 = sld [smem:[#allocation0]]
  $region105: #{tpu_custom_call.1} parent=0
    _
  %s17 = ssub.s32 1, %s15
  %s18 = scalar_select 0, %s17, %s15
  $region1: #{tpu_custom_call.1} parent=0
    #allocation3 [shape = 'u8[8192]{0}', space=vmem, size = 0x2000, scoped, tag = 'input window, operand 0, single buffered']
    #allocation4 [shape = 's32[2]{0}', space=sflag, size = 0x8, scoped, tag = 'scoped memory for tpu_custom_call.1']
    #allocation5 [shape = 's32[2]{0}', space=sflag, size = 0x8, scoped, tag = 'scoped memory for tpu_custom_call.1']
    #allocation6 [shape = 'u8[8192]{0}', space=vmem, size = 0x2000, scoped, tag = 'input window, operand 1, single buffered']
    #allocation7 [shape = 's32[1]{0}', space=sflag, size = 0x4, scoped, tag = 'scoped memory for tpu_custom_call.1']
    #allocation8 [shape = 'u8[8192]{0}', space=vmem, size = 0x2000, scoped, tag = 'output window, operand 0, single buffered']
    %19 = vsyncpa [#allocation4], 0
    %20 = vsyncpa [#allocation7], 0
    %21 = vsyncpa [#allocation5], 0
    loop: start=0, step=1, limit=4
    $region2: #{tpu_custom_call.1} parent=1 // loop_pre_header
      _
    $region3: #{tpu_custom_call.1} parent=1 // loop_header
      %s23 = sphi 0, %s27
      %p24 = scmp.ge.s32.totalorder %s23, 4
      %s31 = sphi 0, %s31
      %s33 = sphi 0, %s31
      %s34 = sphi 0, %s33
      %s48 = sphi 0, %s34
      %s52 = sphi 0, %s52
      %s54 = sphi 0, %s52
      %s55 = sphi 0, %s54
      %s69 = sphi 0, %s55
      %s75 = sphi 0, %s77
      %s78 = sphi 0, %s75
      %s79 = sphi 0, %s78
      %s95 = sphi 0, %s79
      %s101 = sphi 0, %s103
      %s104 = sphi 0, %s101
      %s105 = sphi 0, %s104
      %s121 = sphi 0, %s105
      %s127 = sphi 0, %s129
      %s130 = sphi 0, %s127
      %s131 = sphi 0, %s130
      %s147 = sphi 0, %s131
      %s153 = sphi 0, %s155
      %s156 = sphi 0, %s153
      %s157 = sphi 0, %s156
      %s173 = sphi 0, %s157
      %s179 = sphi 0, %s181
      %s182 = sphi 0, %s179
      %s183 = sphi 0, %s182
      %s199 = sphi 0, %s183
      %s205 = sphi 0, %s207
      %s208 = sphi 0, %s205
      %s209 = sphi 0, %s208
      %s225 = sphi 0, %s209
      %s231 = sphi 0, %s233
      %s234 = sphi 0, %s231
      %s235 = sphi 0, %s234
      %s251 = sphi 0, %s235
      %s257 = sphi 0, %s259
      %s260 = sphi 0, %s257
      %s261 = sphi 0, %s260
      %s277 = sphi 0, %s261
      %s283 = sphi 0, %s285
      %s286 = sphi 0, %s283
      %s287 = sphi 0, %s286
      %s303 = sphi 0, %s287
      %s309 = sphi 0, %s311
      %s312 = sphi 0, %s309
      %s313 = sphi 0, %s312
      %s329 = sphi 0, %s313
      %s335 = sphi 0, %s337
      %s338 = sphi 0, %s335
      %s339 = sphi 0, %s338
      %s355 = sphi 0, %s339
      %s361 = sphi 0, %s363
      %s364 = sphi 0, %s361
      %s365 = sphi 0, %s364
      %s381 = sphi 0, %s365
      %s385 = sphi 0, %s385
      %s387 = sphi 0, %s385
      %s388 = sphi 0, %s387
      %s402 = sphi 0, %s388
    $region4: #{tpu_custom_call.1} parent=1 // loop_header_branch
      %26 = sbr.rel (%p24) target = $region8
    $region5: #{tpu_custom_call.1} parent=1 // loop_body
      %s28 = ssub.s32 %s23, 1
      %s29 = ssub.s32 %s23, 2
      %s30 = sadd.s32 %s23, 1
      %s32 = sadd.s32 %s31, 1
      %p35 = scmp.eq.s32.totalorder %s23, 1
      %p36 = scmp.ne.s32.totalorder %s31, %s33
      %p37 = scmp.eq.s32.totalorder %s23, 0
      %p38 = por %p36, %p37
      %p39 = scmp.ne.s32.totalorder %s31, %s33
      %p40 = scmp.eq.s32.totalorder %s28, 1
      %p41 = por %p39, %p40
      %p42 = scmp.ne.s32.totalorder %s33, %s34
      %p43 = scmp.eq.s32.totalorder %s28, 0
      %p44 = por %p42, %p43
      %p45 = scmp.ne.s32.totalorder %s33, %s34
      %p46 = scmp.eq.s32.totalorder %s29, 1
      %p47 = por %p45, %p46
      %p49 = scmp.ne.s32.totalorder %s34, %s48
      %p50 = scmp.eq.s32.totalorder %s29, 0
      %p51 = por %p49, %p50
      %s53 = sadd.s32 %s52, 1
      %p56 = scmp.eq.s32.totalorder %s23, 1
      %p57 = scmp.ne.s32.totalorder %s52, %s54
      %p58 = scmp.eq.s32.totalorder %s23, 0
      %p59 = por %p57, %p58
      %p60 = scmp.ne.s32.totalorder %s52, %s54
      %p61 = scmp.eq.s32.totalorder %s28, 1
      %p62 = por %p60, %p61
      %p63 = scmp.ne.s32.totalorder %s54, %s55
      %p64 = scmp.eq.s32.totalorder %s28, 0
      %p65 = por %p63, %p64
      %p66 = scmp.ne.s32.totalorder %s54, %s55
      %p67 = scmp.eq.s32.totalorder %s29, 1
      %p68 = por %p66, %p67
      %p70 = scmp.ne.s32.totalorder %s55, %s69
      %p71 = scmp.eq.s32.totalorder %s29, 0
      %p72 = por %p70, %p71
      %s73 = ssub.s32 %s23, %s30
      %p74 = scmp.eq.s32.totalorder %s73, 0
      %s76 = sadd.s32 %s75, 1
      %s77 = scalar_select %p74, %s75, %s76
      %p80 = pneg %p74
      %p81 = scmp.eq.s32.totalorder %s23, 1
      %p82 = por %p80, %p81
      %p83 = scmp.ne.s32.totalorder %s75, %s78
      %p84 = scmp.eq.s32.totalorder %s23, 0
      %p85 = por %p83, %p84
      %p86 = scmp.ne.s32.totalorder %s75, %s78
      %p87 = scmp.eq.s32.totalorder %s28, 1
      %p88 = por %p86, %p87
      %p89 = scmp.ne.s32.totalorder %s78, %s79
      %p90 = scmp.eq.s32.totalorder %s28, 0
      %p91 = por %p89, %p90
      %p92 = scmp.ne.s32.totalorder %s78, %s79
      %p93 = scmp.eq.s32.totalorder %s29, 1
      %p94 = por %p92, %p93
      %p96 = scmp.ne.s32.totalorder %s79, %s95
      %p97 = scmp.eq.s32.totalorder %s29, 0
      %p98 = por %p96, %p97
      %s99 = ssub.s32 %s23, %s30
      %p100 = scmp.eq.s32.totalorder %s99, 0
      %s102 = sadd.s32 %s101, 1
      %s103 = scalar_select %p100, %s101, %s102
      %p106 = pneg %p100
      %p107 = scmp.eq.s32.totalorder %s23, 1
      %p108 = por %p106, %p107
      %p109 = scmp.ne.s32.totalorder %s101, %s104
      %p110 = scmp.eq.s32.totalorder %s23, 0
      %p111 = por %p109, %p110
      %p112 = scmp.ne.s32.totalorder %s101, %s104
      %p113 = scmp.eq.s32.totalorder %s28, 1
      %p114 = por %p112, %p113
      %p115 = scmp.ne.s32.totalorder %s104, %s105
      %p116 = scmp.eq.s32.totalorder %s28, 0
      %p117 = por %p115, %p116
      %p118 = scmp.ne.s32.totalorder %s104, %s105
      %p119 = scmp.eq.s32.totalorder %s29, 1
      %p120 = por %p118, %p119
      %p122 = scmp.ne.s32.totalorder %s105, %s121
      %p123 = scmp.eq.s32.totalorder %s29, 0
      %p124 = por %p122, %p123
      %s125 = ssub.s32 %s23, %s30
      %p126 = scmp.eq.s32.totalorder %s125, 0
      %s128 = sadd.s32 %s127, 1
      %s129 = scalar_select %p126, %s127, %s128
      %p132 = pneg %p126
      %p133 = scmp.eq.s32.totalorder %s23, 1
      %p134 = por %p132, %p133
      %p135 = scmp.ne.s32.totalorder %s127, %s130
      %p136 = scmp.eq.s32.totalorder %s23, 0
      %p137 = por %p135, %p136
      %p138 = scmp.ne.s32.totalorder %s127, %s130
      %p139 = scmp.eq.s32.totalorder %s28, 1
      %p140 = por %p138, %p139
      %p141 = scmp.ne.s32.totalorder %s130, %s131
      %p142 = scmp.eq.s32.totalorder %s28, 0
      %p143 = por %p141, %p142
      %p144 = scmp.ne.s32.totalorder %s130, %s131
      %p145 = scmp.eq.s32.totalorder %s29, 1
      %p146 = por %p144, %p145
      %p148 = scmp.ne.s32.totalorder %s131, %s147
      %p149 = scmp.eq.s32.totalorder %s29, 0
      %p150 = por %p148, %p149
      %s151 = ssub.s32 %s23, %s30
      %p152 = scmp.eq.s32.totalorder %s151, 0
      %s154 = sadd.s32 %s153, 1
      %s155 = scalar_select %p152, %s153, %s154
      %p158 = pneg %p152
      %p159 = scmp.eq.s32.totalorder %s23, 1
      %p160 = por %p158, %p159
      %p161 = scmp.ne.s32.totalorder %s153, %s156
      %p162 = scmp.eq.s32.totalorder %s23, 0
      %p163 = por %p161, %p162
      %p164 = scmp.ne.s32.totalorder %s153, %s156
      %p165 = scmp.eq.s32.totalorder %s28, 1
      %p166 = por %p164, %p165
      %p167 = scmp.ne.s32.totalorder %s156, %s157
      %p168 = scmp.eq.s32.totalorder %s28, 0
      %p169 = por %p167, %p168
      %p170 = scmp.ne.s32.totalorder %s156, %s157
      %p171 = scmp.eq.s32.totalorder %s29, 1
      %p172 = por %p170, %p171
      %p174 = scmp.ne.s32.totalorder %s157, %s173
      %p175 = scmp.eq.s32.totalorder %s29, 0
      %p176 = por %p174, %p175
      %s177 = ssub.s32 %s23, %s30
      %p178 = scmp.eq.s32.totalorder %s177, 0
      %s180 = sadd.s32 %s179, 1
      %s181 = scalar_select %p178, %s179, %s180
      %p184 = pneg %p178
      %p185 = scmp.eq.s32.totalorder %s23, 1
      %p186 = por %p184, %p185
      %p187 = scmp.ne.s32.totalorder %s179, %s182
      %p188 = scmp.eq.s32.totalorder %s23, 0
      %p189 = por %p187, %p188
      %p190 = scmp.ne.s32.totalorder %s179, %s182
      %p191 = scmp.eq.s32.totalorder %s28, 1
      %p192 = por %p190, %p191
      %p193 = scmp.ne.s32.totalorder %s182, %s183
      %p194 = scmp.eq.s32.totalorder %s28, 0
      %p195 = por %p193, %p194
      %p196 = scmp.ne.s32.totalorder %s182, %s183
      %p197 = scmp.eq.s32.totalorder %s29, 1
      %p198 = por %p196, %p197
      %p200 = scmp.ne.s32.totalorder %s183, %s199
      %p201 = scmp.eq.s32.totalorder %s29, 0
      %p202 = por %p200, %p201
      %s203 = ssub.s32 %s23, %s30
      %p204 = scmp.eq.s32.totalorder %s203, 0
      %s206 = sadd.s32 %s205, 1
      %s207 = scalar_select %p204, %s205, %s206
      %p210 = pneg %p204
      %p211 = scmp.eq.s32.totalorder %s23, 1
      %p212 = por %p210, %p211
      %p213 = scmp.ne.s32.totalorder %s205, %s208
      %p214 = scmp.eq.s32.totalorder %s23, 0
      %p215 = por %p213, %p214
      %p216 = scmp.ne.s32.totalorder %s205, %s208
      %p217 = scmp.eq.s32.totalorder %s28, 1
      %p218 = por %p216, %p217
      %p219 = scmp.ne.s32.totalorder %s208, %s209
      %p220 = scmp.eq.s32.totalorder %s28, 0
      %p221 = por %p219, %p220
      %p222 = scmp.ne.s32.totalorder %s208, %s209
      %p223 = scmp.eq.s32.totalorder %s29, 1
      %p224 = por %p222, %p223
      %p226 = scmp.ne.s32.totalorder %s209, %s225
      %p227 = scmp.eq.s32.totalorder %s29, 0
      %p228 = por %p226, %p227
      %s229 = ssub.s32 %s23, %s30
      %p230 = scmp.eq.s32.totalorder %s229, 0
      %s232 = sadd.s32 %s231, 1
      %s233 = scalar_select %p230, %s231, %s232
      %p236 = pneg %p230
      %p237 = scmp.eq.s32.totalorder %s23, 1
      %p238 = por %p236, %p237
      %p239 = scmp.ne.s32.totalorder %s231, %s234
      %p240 = scmp.eq.s32.totalorder %s23, 0
      %p241 = por %p239, %p240
      %p242 = scmp.ne.s32.totalorder %s231, %s234
      %p243 = scmp.eq.s32.totalorder %s28, 1
      %p244 = por %p242, %p243
      %p245 = scmp.ne.s32.totalorder %s234, %s235
      %p246 = scmp.eq.s32.totalorder %s28, 0
      %p247 = por %p245, %p246
      %p248 = scmp.ne.s32.totalorder %s234, %s235
      %p249 = scmp.eq.s32.totalorder %s29, 1
      %p250 = por %p248, %p249
      %p252 = scmp.ne.s32.totalorder %s235, %s251
      %p253 = scmp.eq.s32.totalorder %s29, 0
      %p254 = por %p252, %p253
      %s255 = ssub.s32 %s23, %s30
      %p256 = scmp.eq.s32.totalorder %s255, 0
      %s258 = sadd.s32 %s257, 1
      %s259 = scalar_select %p256, %s257, %s258
      %p262 = pneg %p256
      %p263 = scmp.eq.s32.totalorder %s23, 1
      %p264 = por %p262, %p263
      %p265 = scmp.ne.s32.totalorder %s257, %s260
      %p266 = scmp.eq.s32.totalorder %s23, 0
      %p267 = por %p265, %p266
      %p268 = scmp.ne.s32.totalorder %s257, %s260
      %p269 = scmp.eq.s32.totalorder %s28, 1
      %p270 = por %p268, %p269
      %p271 = scmp.ne.s32.totalorder %s260, %s261
      %p272 = scmp.eq.s32.totalorder %s28, 0
      %p273 = por %p271, %p272
      %p274 = scmp.ne.s32.totalorder %s260, %s261
      %p275 = scmp.eq.s32.totalorder %s29, 1
      %p276 = por %p274, %p275
      %p278 = scmp.ne.s32.totalorder %s261, %s277
      %p279 = scmp.eq.s32.totalorder %s29, 0
      %p280 = por %p278, %p279
      %s281 = ssub.s32 %s23, %s30
      %p282 = scmp.eq.s32.totalorder %s281, 0
      %s284 = sadd.s32 %s283, 1
      %s285 = scalar_select %p282, %s283, %s284
      %p288 = pneg %p282
      %p289 = scmp.eq.s32.totalorder %s23, 1
      %p290 = por %p288, %p289
      %p291 = scmp.ne.s32.totalorder %s283, %s286
      %p292 = scmp.eq.s32.totalorder %s23, 0
      %p293 = por %p291, %p292
      %p294 = scmp.ne.s32.totalorder %s283, %s286
      %p295 = scmp.eq.s32.totalorder %s28, 1
      %p296 = por %p294, %p295
      %p297 = scmp.ne.s32.totalorder %s286, %s287
      %p298 = scmp.eq.s32.totalorder %s28, 0
      %p299 = por %p297, %p298
      %p300 = scmp.ne.s32.totalorder %s286, %s287
      %p301 = scmp.eq.s32.totalorder %s29, 1
      %p302 = por %p300, %p301
      %p304 = scmp.ne.s32.totalorder %s287, %s303
      %p305 = scmp.eq.s32.totalorder %s29, 0
      %p306 = por %p304, %p305
      %s307 = ssub.s32 %s23, %s30
      %p308 = scmp.eq.s32.totalorder %s307, 0
      %s310 = sadd.s32 %s309, 1
      %s311 = scalar_select %p308, %s309, %s310
      %p314 = pneg %p308
      %p315 = scmp.eq.s32.totalorder %s23, 1
      %p316 = por %p314, %p315
      %p317 = scmp.ne.s32.totalorder %s309, %s312
      %p318 = scmp.eq.s32.totalorder %s23, 0
      %p319 = por %p317, %p318
      %p320 = scmp.ne.s32.totalorder %s309, %s312
      %p321 = scmp.eq.s32.totalorder %s28, 1
      %p322 = por %p320, %p321
      %p323 = scmp.ne.s32.totalorder %s312, %s313
      %p324 = scmp.eq.s32.totalorder %s28, 0
      %p325 = por %p323, %p324
      %p326 = scmp.ne.s32.totalorder %s312, %s313
      %p327 = scmp.eq.s32.totalorder %s29, 1
      %p328 = por %p326, %p327
      %p330 = scmp.ne.s32.totalorder %s313, %s329
      %p331 = scmp.eq.s32.totalorder %s29, 0
      %p332 = por %p330, %p331
      %s333 = ssub.s32 %s23, %s30
      %p334 = scmp.eq.s32.totalorder %s333, 0
      %s336 = sadd.s32 %s335, 1
      %s337 = scalar_select %p334, %s335, %s336
      %p340 = pneg %p334
      %p341 = scmp.eq.s32.totalorder %s23, 1
      %p342 = por %p340, %p341
      %p343 = scmp.ne.s32.totalorder %s335, %s338
      %p344 = scmp.eq.s32.totalorder %s23, 0
      %p345 = por %p343, %p344
      %p346 = scmp.ne.s32.totalorder %s335, %s338
      %p347 = scmp.eq.s32.totalorder %s28, 1
      %p348 = por %p346, %p347
      %p349 = scmp.ne.s32.totalorder %s338, %s339
      %p350 = scmp.eq.s32.totalorder %s28, 0
      %p351 = por %p349, %p350
      %p352 = scmp.ne.s32.totalorder %s338, %s339
      %p353 = scmp.eq.s32.totalorder %s29, 1
      %p354 = por %p352, %p353
      %p356 = scmp.ne.s32.totalorder %s339, %s355
      %p357 = scmp.eq.s32.totalorder %s29, 0
      %p358 = por %p356, %p357
      %s359 = ssub.s32 %s23, %s30
      %p360 = scmp.eq.s32.totalorder %s359, 0
      %s362 = sadd.s32 %s361, 1
      %s363 = scalar_select %p360, %s361, %s362
      %p366 = pneg %p360
      %p367 = scmp.eq.s32.totalorder %s23, 1
      %p368 = por %p366, %p367
      %p369 = scmp.ne.s32.totalorder %s361, %s364
      %p370 = scmp.eq.s32.totalorder %s23, 0
      %p371 = por %p369, %p370
      %p372 = scmp.ne.s32.totalorder %s361, %s364
      %p373 = scmp.eq.s32.totalorder %s28, 1
      %p374 = por %p372, %p373
      %p375 = scmp.ne.s32.totalorder %s364, %s365
      %p376 = scmp.eq.s32.totalorder %s28, 0
      %p377 = por %p375, %p376
      %p378 = scmp.ne.s32.totalorder %s364, %s365
      %p379 = scmp.eq.s32.totalorder %s29, 1
      %p380 = por %p378, %p379
      %p382 = scmp.ne.s32.totalorder %s365, %s381
      %p383 = scmp.eq.s32.totalorder %s29, 0
      %p384 = por %p382, %p383
      %s386 = sadd.s32 %s385, 1
      %p389 = scmp.eq.s32.totalorder %s23, 1
      %p390 = scmp.ne.s32.totalorder %s385, %s387
      %p391 = scmp.eq.s32.totalorder %s23, 0
      %p392 = por %p390, %p391
      %p393 = scmp.ne.s32.totalorder %s385, %s387
      %p394 = scmp.eq.s32.totalorder %s28, 1
      %p395 = por %p393, %p394
      %p396 = scmp.ne.s32.totalorder %s387, %s388
      %p397 = scmp.eq.s32.totalorder %s28, 0
      %p398 = por %p396, %p397
      %p399 = scmp.ne.s32.totalorder %s387, %s388
      %p400 = scmp.eq.s32.totalorder %s29, 1
      %p401 = por %p399, %p400
      %p403 = scmp.ne.s32.totalorder %s388, %s402
      %p404 = scmp.eq.s32.totalorder %s29, 0
      %p405 = por %p403, %p404
      %p406 = scmp.le.s32.totalorder 1, %s23
      %p407 = scmp.lt.s32.totalorder %s23, 3
      %p408 = pnand %p406, %p407
      %p409 = pneg %p408
      // Predicated region
      $region9: #{tpu_custom_call.1} parent=5 // pred_check
        _
      $region10: #{tpu_custom_call.1} parent=5 // pred_check_branch
        %411 = sbr.rel (%p408) target = $region12
      $region11: #{tpu_custom_call.1} parent=5 // pred_region
        %s412 = ssub.s32 %s23, 1
        // Predicated region
        $region13: #{tpu_custom_call.1} parent=11 // pred_check
          %p413 = pneg %p44
        $region14: #{tpu_custom_call.1} parent=11 // pred_check_branch
          %415 = sbr.rel (%p413) target = $region16
        $region15: #{tpu_custom_call.1} parent=11 // pred_region
          %s417 = ssub.s32 256, 256
          %418 = vsyncadd [#allocation4], %s417
          %s419 = sshll.u32 [#allocation3], 4
          %s420 = int_to_ptr.vmem [resolvable:$true] %s419
          %425 = dma.hbm_to_vmem [thread:$0]  %s0, 256, %s420, [#allocation4], 128, 128, 8
        $region16: #{tpu_custom_call.1} parent=11 // pred_fallthru
          _
        // Predicated region
        $region17: #{tpu_custom_call.1} parent=11 // pred_check
          %p426 = pneg %p65
        $region18: #{tpu_custom_call.1} parent=11 // pred_check_branch
          %428 = sbr.rel (%p426) target = $region20
        $region19: #{tpu_custom_call.1} parent=11 // pred_region
          %s430 = ssub.s32 256, 256
          %431 = vsyncadd [#allocation7], %s430
          %s432 = sshll.u32 [#allocation6], 4
          %s433 = int_to_ptr.vmem [resolvable:$true] %s432
          %438 = dma.hbm_to_vmem [thread:$0]  %s1, 256, %s433, [#allocation7], 128, 128, 8
        $region20: #{tpu_custom_call.1} parent=11 // pred_fallthru
          _
      $region12: #{tpu_custom_call.1} parent=5 // pred_fallthru
        _
      %p439 = scmp.lt.s32.totalorder %s23, 2
      // Predicated region
      $region21: #{tpu_custom_call.1} parent=5 // pred_check
        %p440 = pneg %p439
      $region22: #{tpu_custom_call.1} parent=5 // pred_check_branch
        %442 = sbr.rel (%p440) target = $region24
      $region23: #{tpu_custom_call.1} parent=5 // pred_region
        // Predicated region
        $region25: #{tpu_custom_call.1} parent=23 // pred_check
          %p443 = pneg %p85
        $region26: #{tpu_custom_call.1} parent=23 // pred_check_branch
          %445 = sbr.rel (%p443) target = $region28
        $region27: #{tpu_custom_call.1} parent=23 // pred_region
          %p446 = scmp.lt.s32.totalorder %s23, 1
          %s447 = scalar_select %p446, %s23, 1
          %s448 = smul.addr %s447, 4
          %s449 = smul.addr %s448, 4
          %s450 = scalar_lea.vmem %s2, %s449
        $region28: #{tpu_custom_call.1} parent=23 // pred_fallthru
          _
        // Predicated region
        $region29: #{tpu_custom_call.1} parent=23 // pred_check
          %p451 = pneg %p111
        $region30: #{tpu_custom_call.1} parent=23 // pred_check_branch
          %453 = sbr.rel (%p451) target = $region32
        $region31: #{tpu_custom_call.1} parent=23 // pred_region
          %p454 = scmp.lt.s32.totalorder %s23, 1
          %s455 = scalar_select %p454, %s23, 1
          %s456 = scalar_lea.vmem %s3, %s455
        $region32: #{tpu_custom_call.1} parent=23 // pred_fallthru
          _
        // Predicated region
        $region33: #{tpu_custom_call.1} parent=23 // pred_check
          %p457 = pneg %p137
        $region34: #{tpu_custom_call.1} parent=23 // pred_check_branch
          %459 = sbr.rel (%p457) target = $region36
        $region35: #{tpu_custom_call.1} parent=23 // pred_region
          %p460 = scmp.lt.s32.totalorder %s23, 1
          %s461 = scalar_select %p460, %s23, 1
          %s462 = smul.addr %s461, 4
          %s463 = smul.addr %s462, 4
          %s464 = scalar_lea.vmem %s4, %s463
        $region36: #{tpu_custom_call.1} parent=23 // pred_fallthru
          _
        // Predicated region
        $region37: #{tpu_custom_call.1} parent=23 // pred_check
          %p465 = pneg %p163
        $region38: #{tpu_custom_call.1} parent=23 // pred_check_branch
          %467 = sbr.rel (%p465) target = $region40
        $region39: #{tpu_custom_call.1} parent=23 // pred_region
          %p468 = scmp.lt.s32.totalorder %s23, 1
          %s469 = scalar_select %p468, %s23, 1
          %s470 = scalar_lea.vmem %s5, %s469
        $region40: #{tpu_custom_call.1} parent=23 // pred_fallthru
          _
        // Predicated region
        $region41: #{tpu_custom_call.1} parent=23 // pred_check
          %p471 = pneg %p189
        $region42: #{tpu_custom_call.1} parent=23 // pred_check_branch
          %473 = sbr.rel (%p471) target = $region44
        $region43: #{tpu_custom_call.1} parent=23 // pred_region
          %p474 = scmp.lt.s32.totalorder %s23, 1
          %s475 = scalar_select %p474, %s23, 1
          %s476 = smul.addr %s475, 4
          %s477 = smul.addr %s476, 4
          %s478 = scalar_lea.vmem %s6, %s477
        $region44: #{tpu_custom_call.1} parent=23 // pred_fallthru
          _
        // Predicated region
        $region45: #{tpu_custom_call.1} parent=23 // pred_check
          %p479 = pneg %p215
        $region46: #{tpu_custom_call.1} parent=23 // pred_check_branch
          %481 = sbr.rel (%p479) target = $region48
        $region47: #{tpu_custom_call.1} parent=23 // pred_region
          %p482 = scmp.lt.s32.totalorder %s23, 1
          %s483 = scalar_select %p482, %s23, 1
          %s484 = scalar_lea.vmem %s7, %s483
        $region48: #{tpu_custom_call.1} parent=23 // pred_fallthru
          _
        // Predicated region
        $region49: #{tpu_custom_call.1} parent=23 // pred_check
          %p485 = pneg %p241
        $region50: #{tpu_custom_call.1} parent=23 // pred_check_branch
          %487 = sbr.rel (%p485) target = $region52
        $region51: #{tpu_custom_call.1} parent=23 // pred_region
          %p488 = scmp.lt.s32.totalorder %s23, 1
          %s489 = scalar_select %p488, %s23, 1
          %s490 = smul.addr %s489, 8
          %s491 = smul.addr %s490, 4
          %s492 = scalar_lea.vmem %s8, %s491
        $region52: #{tpu_custom_call.1} parent=23 // pred_fallthru
          _
        // Predicated region
        $region53: #{tpu_custom_call.1} parent=23 // pred_check
          %p493 = pneg %p267
        $region54: #{tpu_custom_call.1} parent=23 // pred_check_branch
          %495 = sbr.rel (%p493) target = $region56
        $region55: #{tpu_custom_call.1} parent=23 // pred_region
          %p496 = scmp.lt.s32.totalorder %s23, 1
          %s497 = scalar_select %p496, %s23, 1
          %s498 = scalar_lea.vmem %s9, %s497
        $region56: #{tpu_custom_call.1} parent=23 // pred_fallthru
          _
        // Predicated region
        $region57: #{tpu_custom_call.1} parent=23 // pred_check
          %p499 = pneg %p293
        $region58: #{tpu_custom_call.1} parent=23 // pred_check_branch
          %501 = sbr.rel (%p499) target = $region60
        $region59: #{tpu_custom_call.1} parent=23 // pred_region
          %p502 = scmp.lt.s32.totalorder %s23, 1
          %s503 = scalar_select %p502, %s23, 1
          %s504 = scalar_lea.vmem %s10, %s503
        $region60: #{tpu_custom_call.1} parent=23 // pred_fallthru
          _
        // Predicated region
        $region61: #{tpu_custom_call.1} parent=23 // pred_check
          %p505 = pneg %p319
        $region62: #{tpu_custom_call.1} parent=23 // pred_check_branch
          %507 = sbr.rel (%p505) target = $region64
        $region63: #{tpu_custom_call.1} parent=23 // pred_region
          %p508 = scmp.lt.s32.totalorder %s23, 1
          %s509 = scalar_select %p508, %s23, 1
          %s510 = scalar_lea.vmem %s11, %s509
        $region64: #{tpu_custom_call.1} parent=23 // pred_fallthru
          _
        // Predicated region
        $region65: #{tpu_custom_call.1} parent=23 // pred_check
          %p511 = pneg %p345
        $region66: #{tpu_custom_call.1} parent=23 // pred_check_branch
          %513 = sbr.rel (%p511) target = $region68
        $region67: #{tpu_custom_call.1} parent=23 // pred_region
          %p514 = scmp.lt.s32.totalorder %s23, 1
          %s515 = scalar_select %p514, %s23, 1
          %s516 = scalar_lea.vmem %s12, %s515
        $region68: #{tpu_custom_call.1} parent=23 // pred_fallthru
          _
        // Predicated region
        $region69: #{tpu_custom_call.1} parent=23 // pred_check
          %p517 = pneg %p371
        $region70: #{tpu_custom_call.1} parent=23 // pred_check_branch
          %519 = sbr.rel (%p517) target = $region72
        $region71: #{tpu_custom_call.1} parent=23 // pred_region
          %p520 = scmp.lt.s32.totalorder %s23, 1
          %s521 = scalar_select %p520, %s23, 1
          %s522 = scalar_lea.vmem %s13, %s521
        $region72: #{tpu_custom_call.1} parent=23 // pred_fallthru
          _
      $region24: #{tpu_custom_call.1} parent=5 // pred_fallthru
        _
      %p523 = scmp.le.s32.totalorder 1, %s23
      %p524 = scmp.lt.s32.totalorder %s23, 3
      %p525 = pnand %p523, %p524
      %p526 = pneg %p525
      // Predicated region
      $region73: #{tpu_custom_call.1} parent=5 // pred_check
        _
      $region74: #{tpu_custom_call.1} parent=5 // pred_check_branch
        %528 = sbr.rel (%p525) target = $region76
      $region75: #{tpu_custom_call.1} parent=5 // pred_region
        %s529 = ssub.s32 %s23, 1
        // Predicated region
        $region77: #{tpu_custom_call.1} parent=75 // pred_check
          %p530 = pneg %p44
        $region78: #{tpu_custom_call.1} parent=75 // pred_check_branch
          %532 = sbr.rel (%p530) target = $region80
        $region79: #{tpu_custom_call.1} parent=75 // pred_region
          %533 = dma.done [#allocation4], 256
        $region80: #{tpu_custom_call.1} parent=75 // pred_fallthru
          _
        // Predicated region
        $region81: #{tpu_custom_call.1} parent=75 // pred_check
          %p534 = pneg %p65
        $region82: #{tpu_custom_call.1} parent=75 // pred_check_branch
          %536 = sbr.rel (%p534) target = $region84
        $region83: #{tpu_custom_call.1} parent=75 // pred_region
          %537 = dma.done [#allocation7], 256
        $region84: #{tpu_custom_call.1} parent=75 // pred_fallthru
          _
        %p538 = pneg %p44
        %p539 = pneg %p41
        %p540 = pneg %p65
        %p541 = pneg %p62
        %p542 = scmp.lt.s32.totalorder %s28, 1
        %s543 = scalar_select %p542, %s28, 1
        %s544 = smul.addr %s543, 4
        %s545 = smul.addr %s544, 4
        %s546 = scalar_lea.vmem %s2, %s545
        %p547 = pneg %p91
        %p548 = pneg %p88
        %p549 = scmp.lt.s32.totalorder %s28, 1
        %s550 = scalar_select %p549, %s28, 1
        %s551 = scalar_lea.vmem %s3, %s550
        %p552 = pneg %p117
        %p553 = pneg %p114
        %p554 = scmp.lt.s32.totalorder %s28, 1
        %s555 = scalar_select %p554, %s28, 1
        %s556 = smul.addr %s555, 4
        %s557 = smul.addr %s556, 4
        %s558 = scalar_lea.vmem %s4, %s557
        %p559 = pneg %p143
        %p560 = pneg %p140
        %p561 = scmp.lt.s32.totalorder %s28, 1
        %s562 = scalar_select %p561, %s28, 1
        %s563 = scalar_lea.vmem %s5, %s562
        %p564 = pneg %p169
        %p565 = pneg %p166
        %p566 = scmp.lt.s32.totalorder %s28, 1
        %s567 = scalar_select %p566, %s28, 1
        %s568 = smul.addr %s567, 4
        %s569 = smul.addr %s568, 4
        %s570 = scalar_lea.vmem %s6, %s569
        %p571 = pneg %p195
        %p572 = pneg %p192
        %p573 = scmp.lt.s32.totalorder %s28, 1
        %s574 = scalar_select %p573, %s28, 1
        %s575 = scalar_lea.vmem %s7, %s574
        %p576 = pneg %p221
        %p577 = pneg %p218
        %p578 = scmp.lt.s32.totalorder %s28, 1
        %s579 = scalar_select %p578, %s28, 1
        %s580 = smul.addr %s579, 8
        %s581 = smul.addr %s580, 4
        %s582 = scalar_lea.vmem %s8, %s581
        %p583 = pneg %p247
        %p584 = pneg %p244
        %p585 = scmp.lt.s32.totalorder %s28, 1
        %s586 = scalar_select %p585, %s28, 1
        %s587 = scalar_lea.vmem %s9, %s586
        %p588 = pneg %p273
        %p589 = pneg %p270
        %p590 = scmp.lt.s32.totalorder %s28, 1
        %s591 = scalar_select %p590, %s28, 1
        %s592 = scalar_lea.vmem %s10, %s591
        %p593 = pneg %p299
        %p594 = pneg %p296
        %p595 = scmp.lt.s32.totalorder %s28, 1
        %s596 = scalar_select %p595, %s28, 1
        %s597 = scalar_lea.vmem %s11, %s596
        %p598 = pneg %p325
        %p599 = pneg %p322
        %p600 = scmp.lt.s32.totalorder %s28, 1
        %s601 = scalar_select %p600, %s28, 1
        %s602 = scalar_lea.vmem %s12, %s601
        %p603 = pneg %p351
        %p604 = pneg %p348
        %p605 = scmp.lt.s32.totalorder %s28, 1
        %s606 = scalar_select %p605, %s28, 1
        %s607 = scalar_lea.vmem %s13, %s606
        %p608 = pneg %p377
        %p609 = pneg %p374
        %p610 = pneg %p398
        %p611 = pneg %p395
        %p612 = scmp.lt.s32.totalorder %s28, 1
        %s613 = scalar_select %p612, %s28, 1
        %s614 = smul.addr %s613, 4
        %s615 = smul.addr %s614, 4
        %s616 = scalar_lea.vmem %s2, %s615
        %p617 = scmp.lt.s32.totalorder %s28, 1
        %s618 = scalar_select %p617, %s28, 1
        %s619 = scalar_lea.vmem %s3, %s618
        %p620 = scmp.lt.s32.totalorder %s28, 1
        %s621 = scalar_select %p620, %s28, 1
        %s622 = smul.addr %s621, 4
        %s623 = smul.addr %s622, 4
        %s624 = scalar_lea.vmem %s4, %s623
        %p625 = scmp.lt.s32.totalorder %s28, 1
        %s626 = scalar_select %p625, %s28, 1
        %s627 = scalar_lea.vmem %s5, %s626
        %p628 = scmp.lt.s32.totalorder %s28, 1
        %s629 = scalar_select %p628, %s28, 1
        %s630 = smul.addr %s629, 4
        %s631 = smul.addr %s630, 4
        %s632 = scalar_lea.vmem %s6, %s631
        %p633 = scmp.lt.s32.totalorder %s28, 1
        %s634 = scalar_select %p633, %s28, 1
        %s635 = scalar_lea.vmem %s7, %s634
        %p636 = scmp.lt.s32.totalorder %s28, 1
        %s637 = scalar_select %p636, %s28, 1
        %s638 = smul.addr %s637, 8
        %s639 = smul.addr %s638, 4
        %s640 = scalar_lea.vmem %s8, %s639
        %p641 = scmp.lt.s32.totalorder %s28, 1
        %s642 = scalar_select %p641, %s28, 1
        %s643 = scalar_lea.vmem %s9, %s642
        %p644 = scmp.lt.s32.totalorder %s28, 1
        %s645 = scalar_select %p644, %s28, 1
        %s646 = scalar_lea.vmem %s10, %s645
        %p647 = scmp.lt.s32.totalorder %s28, 1
        %s648 = scalar_select %p647, %s28, 1
        %s649 = scalar_lea.vmem %s11, %s648
        %p650 = scmp.lt.s32.totalorder %s28, 1
        %s651 = scalar_select %p650, %s28, 1
        %s652 = scalar_lea.vmem %s12, %s651
        %p653 = scmp.lt.s32.totalorder %s28, 1
        %s654 = scalar_select %p653, %s28, 1
        %s655 = scalar_lea.vmem %s13, %s654
        %p657 = scmp.eq.s32.totalorder %s28, 0
        // Predicated region
        $region85: #{tpu_custom_call.1} parent=75 // pred_check
          %p658 = pneg %p657
        $region86: #{tpu_custom_call.1} parent=75 // pred_check_branch
          %660 = sbr.rel (%p658) target = $region88
        $region87: #{tpu_custom_call.1} parent=75 // pred_region
          %v661 = vld [vmem:[#allocation3] sm:$0xff]
          %v662 = vld [vmem:[#allocation3 + $0x8] sm:$0xff]
          %v663 = vmul.f32 %v661, 5.656854
          %v664 = vmul.f32 %v662, 5.656854
          %v665 = vld [vmem:[#allocation6] sm:$0xff]
          %v666 = vld [vmem:[#allocation6 + $0x8] sm:$0xff]
          %v667 = vadd.f32 %v663, %v665
          %v668 = vadd.f32 %v664, %v666
          %vm669 = vcmask 261120
          %670 = vst.msk [vmem:[#allocation2] sm:$0xff] %vm669, %v667
          %671 = vst.msk [vmem:[#allocation2 + $0x8] sm:$0xff] %vm669, %v668
        $region88: #{tpu_custom_call.1} parent=75 // pred_fallthru
          _
        %v672 = vlaneseq
        %v673 = vshrl.u32 %v672, 7
        %v674 = vlaneseq
        %v675 = vand.u32 %v674, 127
        %vm676 = vcmp.le.s32.totalorder %v675, %v673
        %v677 = vsel %vm676, 0.0, -1e+09
        %v678 = vld [vmem:[%s616] sm:$0xf]
        %v679 = vld [vmem:[%s616 + $0x4] sm:$0xf]
        %v680 = vld [vmem:[%s616 + $0x8] sm:$0xf]
        %v681 = vld [vmem:[%s616 + $0xc] sm:$0xf]
        %v682 = vld [vmem:[%s619] sm:$0x1]
        %v683 = vld [vmem:[%s624] sm:$0xf]
        %v684 = vld [vmem:[%s624 + $0x4] sm:$0xf]
        %v685 = vld [vmem:[%s624 + $0x8] sm:$0xf]
        %v686 = vld [vmem:[%s624 + $0xc] sm:$0xf]
        %v687 = vld [vmem:[%s627] sm:$0x1]
        %v688 = vld [vmem:[%s632] sm:$0xf]
        %v689 = vld [vmem:[%s632 + $0x4] sm:$0xf]
        %v690 = vld [vmem:[%s632 + $0x8] sm:$0xf]
        %v691 = vld [vmem:[%s632 + $0xc] sm:$0xf]
        %v692 = vld [vmem:[%s635] sm:$0x1]
        %v693 = vld [vmem:[%s640] sm:$0xf]
        %v694 = vld [vmem:[%s640 + $0x4] sm:$0xf]
        %v695 = vld [vmem:[%s640 + $0x8] sm:$0xf]
        %v696 = vld [vmem:[%s640 + $0xc] sm:$0xf]
        %v697 = vld [vmem:[%s640 + $0x10] sm:$0xf]
        %v698 = vld [vmem:[%s640 + $0x14] sm:$0xf]
        %v699 = vld [vmem:[%s640 + $0x18] sm:$0xf]
        %v700 = vld [vmem:[%s640 + $0x1c] sm:$0xf]
        %v701 = vld [vmem:[%s643] sm:$0x1]
        %v702 = vld [vmem:[%s646] sm:$0x1]
        %v703 = vld [vmem:[%s649] sm:$0x1]
        %v704 = vld [vmem:[%s652] sm:$0x1]
        %v705 = vld [vmem:[%s655] sm:$0x1]
        %v706 = vld [vmem:[#allocation2] sm:$0xff]
        %v707 = vld [vmem:[#allocation2 + $0x8] sm:$0xff]
        %v708 = vpack.c.bf16 %v707, %v706
        %v710 = vlaneseq
        %v711 = vshrl.u32 %v710, 7
        %v712 = vsub.s32 0, %v711
        %v713 = vrot.slane %v682, %v712
        %v719 = vunpack.c.l.b16 %v678
        %v720 = vunpack.c.l.b16 %v679
        %v721 = vunpack.c.l.b16 %v680
        %v722 = vunpack.c.l.b16 %v681
        %v723 = vpack.c.b16 %v720, %v719
        %v724 = vpack.c.b16 %v722, %v721
        %vm727 = vcmask 261120
        %v729 = vsel %vm727, %v708, 0
        %731 = vmatprep.subr.bf16.mxu0 0
        %732 = vmatpush1.bf16.msra.mxu0 %v723
        %733 = vmatprep.subr.bf16.mxu0 0
        %734 = vmatpush1.bf16.msra.mxu0 %v724
        %735 = vmatprep.subr.bf16.mxu0 0
        %736 = vmatpush1.bf16.msra.mxu0 0
        %737 = vmatprep.subr.bf16.mxu0 0
        %738 = vmatpush1.bf16.msra.mxu0 0
        %739 = vmatprep.subr.bf16.mxu0 0
        %740 = vmatpush1.bf16.msra.mxu0 0
        %741 = vmatprep.subr.bf16.mxu0 0
        %742 = vmatpush1.bf16.msra.mxu0 0
        %743 = vmatprep.subr.bf16.mxu0 0
        %744 = vmatpush1.bf16.msra.mxu0 0
        %745 = vmatprep.subr.bf16.mxu0 0
        %746 = vmatpush1.bf16.msra.mxu0 0
        %747 = vmatprep.subr.bf16.mxu0 0
        %748 = vmatpush1.bf16.msra.mxu0 0
        %749 = vmatprep.subr.bf16.mxu0 0
        %750 = vmatpush1.bf16.msra.mxu0 0
        %751 = vmatprep.subr.bf16.mxu0 0
        %752 = vmatpush1.bf16.msra.mxu0 0
        %753 = vmatprep.subr.bf16.mxu0 0
        %754 = vmatpush1.bf16.msra.mxu0 0
        %755 = vmatprep.subr.bf16.mxu0 0
        %756 = vmatpush1.bf16.msra.mxu0 0
        %757 = vmatprep.subr.bf16.mxu0 0
        %758 = vmatpush1.bf16.msra.mxu0 0
        %759 = vmatprep.subr.bf16.mxu0 0
        %760 = vmatpush1.bf16.msra.mxu0 0
        %761 = vmatprep.subr.bf16.mxu0 0
        %762 = vmatpush1.bf16.msra.mxu0 0
        %763 = vmatprep.mubr.bf16.mxu0 0
        %764 = vmatmul.mubr.bf16.gmra.mrb[0].mxu0 %v729
        %v765 = vpop.f32.mrb[0].mxu0
        %v766 = vadd.f32 %v713, %v765
        %v767 = vpop.f32.mrb[0].mxu0
        %v768 = vpop.f32.mrb[0].mxu0
        %v769 = vadd.f32 %v713, %v768
        %v770 = vpop.f32.mrb[0].mxu0
        %771 = vdwg.mxu0
        %774 = vrot.lane.b32.xlu0 %v766, 112
        %v775 = vpop.permute.xlu0 %774
        %776 = vrot.lane.b32.xlu0 %v769, 112
        %v777 = vpop.permute.xlu0 %776
        %780 = vrot.lane.b32.xlu0 %v766, 96
        %v781 = vpop.permute.xlu0 %780
        %782 = vrot.lane.b32.xlu0 %v769, 96
        %v783 = vpop.permute.xlu0 %782
        %786 = vrot.lane.b32.xlu0 %v766, 80
        %v787 = vpop.permute.xlu0 %786
        %788 = vrot.lane.b32.xlu0 %v769, 80
        %v789 = vpop.permute.xlu0 %788
        %792 = vrot.lane.b32.xlu0 %v766, 64
        %v793 = vpop.permute.xlu0 %792
        %794 = vrot.lane.b32.xlu0 %v769, 64
        %v795 = vpop.permute.xlu0 %794
        %798 = vrot.lane.b32.xlu0 %v766, 48
        %v799 = vpop.permute.xlu0 %798
        %800 = vrot.lane.b32.xlu0 %v769, 48
        %v801 = vpop.permute.xlu0 %800
        %v804 = vcombine.low %v766, %v781
        %v805 = vcombine.high %v766, %v781
        %v807 = vunpack.c.l.s4 1983009808
        %v808 = vunpack.c.0.s8 %v807
        %v809 = vlaneseq
        %v810 = vshrl.u32 %v809, 7
        %v811 = vsub.s32 %v808, %v810
        %v812 = vrot.slane %v804, %v811
        %v814 = vunpack.c.l.s4 1983009808
        %v815 = vunpack.c.0.s8 %v814
        %v816 = vlaneseq
        %v817 = vshrl.u32 %v816, 7
        %v818 = vsub.s32 %v815, %v817
        %v819 = vrot.slane %v805, %v818
        %v820 = vcombine.low %v775, %v787
        %v821 = vcombine.high %v775, %v787
        %v823 = vunpack.c.l.s4 1983009808
        %v824 = vunpack.c.0.s8 %v823
        %v825 = vlaneseq
        %v826 = vshrl.u32 %v825, 7
        %v827 = vsub.s32 %v824, %v826
        %v828 = vrot.slane %v820, %v827
        %v830 = vunpack.c.l.s4 1983009808
        %v831 = vunpack.c.0.s8 %v830
        %v832 = vlaneseq
        %v833 = vshrl.u32 %v832, 7
        %v834 = vsub.s32 %v831, %v833
        %v835 = vrot.slane %v821, %v834
        %v836 = vcombine.high %v793, 0.0
        %v838 = vunpack.c.l.s4 1983009808
        %v839 = vunpack.c.0.s8 %v838
        %v840 = vlaneseq
        %v841 = vshrl.u32 %v840, 7
        %v842 = vsub.s32 %v839, %v841
        %v843 = vrot.slane %v793, %v842
        %v845 = vunpack.c.l.s4 1983009808
        %v846 = vunpack.c.0.s8 %v845
        %v847 = vlaneseq
        %v848 = vshrl.u32 %v847, 7
        %v849 = vsub.s32 %v846, %v848
        %v850 = vrot.slane %v836, %v849
        %v851 = vcombine.high %v799, 0.0
        %v853 = vunpack.c.l.s4 1983009808
        %v854 = vunpack.c.0.s8 %v853
        %v855 = vlaneseq
        %v856 = vshrl.u32 %v855, 7
        %v857 = vsub.s32 %v854, %v856
        %v858 = vrot.slane %v799, %v857
        %v860 = vunpack.c.l.s4 1983009808
        %v861 = vunpack.c.0.s8 %v860
        %v862 = vlaneseq
        %v863 = vshrl.u32 %v862, 7
        %v864 = vsub.s32 %v861, %v863
        %v865 = vrot.slane %v851, %v864
        %v866 = vcombine.low %v812, %v828
        %v867 = vcombine.high %v812, %v828
        %v869 = vunpack.c.l.s4 1934713408
        %v870 = vunpack.c.0.s8 %v869
        %v871 = vlaneseq
        %v872 = vshrl.u32 %v871, 7
        %v873 = vsub.s32 %v870, %v872
        %v874 = vrot.slane %v866, %v873
        %v876 = vunpack.c.l.s4 1934713408
        %v877 = vunpack.c.0.s8 %v876
        %v878 = vlaneseq
        %v879 = vshrl.u32 %v878, 7
        %v880 = vsub.s32 %v877, %v879
        %v881 = vrot.slane %v867, %v880
        %v882 = vcombine.low %v819, %v835
        %v883 = vcombine.high %v819, %v835
        %v885 = vunpack.c.l.s4 1934713408
        %v886 = vunpack.c.0.s8 %v885
        %v887 = vlaneseq
        %v888 = vshrl.u32 %v887, 7
        %v889 = vsub.s32 %v886, %v888
        %v890 = vrot.slane %v882, %v889
        %v892 = vunpack.c.l.s4 1934713408
        %v893 = vunpack.c.0.s8 %v892
        %v894 = vlaneseq
        %v895 = vshrl.u32 %v894, 7
        %v896 = vsub.s32 %v893, %v895
        %v897 = vrot.slane %v883, %v896
        %v898 = vcombine.low %v843, %v858
        %v899 = vcombine.high %v843, %v858
        %v901 = vunpack.c.l.s4 1934713408
        %v902 = vunpack.c.0.s8 %v901
        %v903 = vlaneseq
        %v904 = vshrl.u32 %v903, 7
        %v905 = vsub.s32 %v902, %v904
        %v906 = vrot.slane %v898, %v905
        %v908 = vunpack.c.l.s4 1934713408
        %v909 = vunpack.c.0.s8 %v908
        %v910 = vlaneseq
        %v911 = vshrl.u32 %v910, 7
        %v912 = vsub.s32 %v909, %v911
        %v913 = vrot.slane %v899, %v912
        %v914 = vcombine.low %v850, %v865
        %v915 = vcombine.high %v850, %v865
        %v917 = vunpack.c.l.s4 1934713408
        %v918 = vunpack.c.0.s8 %v917
        %v919 = vlaneseq
        %v920 = vshrl.u32 %v919, 7
        %v921 = vsub.s32 %v918, %v920
        %v922 = vrot.slane %v914, %v921
        %v924 = vunpack.c.l.s4 1934713408
        %v925 = vunpack.c.0.s8 %v924
        %v926 = vlaneseq
        %v927 = vshrl.u32 %v926, 7
        %v928 = vsub.s32 %v925, %v927
        %v929 = vrot.slane %v915, %v928
        %v930 = vcombine.low %v874, %v906
        %v931 = vcombine.high %v874, %v906
        %v932 = vcombine.low %v881, %v913
        %v933 = vcombine.high %v881, %v913
        %v934 = vcombine.low %v890, %v922
        %v935 = vcombine.high %v890, %v922
        %v936 = vcombine.low %v897, %v929
        %v937 = vcombine.high %v897, %v929
        %v938 = vcombine.low %v769, %v783
        %v939 = vcombine.high %v769, %v783
        %v941 = vunpack.c.l.s4 1983009808
        %v942 = vunpack.c.0.s8 %v941
        %v943 = vlaneseq
        %v944 = vshrl.u32 %v943, 7
        %v945 = vsub.s32 %v942, %v944
        %v946 = vrot.slane %v938, %v945
        %v948 = vunpack.c.l.s4 1983009808
        %v949 = vunpack.c.0.s8 %v948
        %v950 = vlaneseq
        %v951 = vshrl.u32 %v950, 7
        %v952 = vsub.s32 %v949, %v951
        %v953 = vrot.slane %v939, %v952
        %v954 = vcombine.low %v777, %v789
        %v955 = vcombine.high %v777, %v789
        %v957 = vunpack.c.l.s4 1983009808
        %v958 = vunpack.c.0.s8 %v957
        %v959 = vlaneseq
        %v960 = vshrl.u32 %v959, 7
        %v961 = vsub.s32 %v958, %v960
        %v962 = vrot.slane %v954, %v961
        %v964 = vunpack.c.l.s4 1983009808
        %v965 = vunpack.c.0.s8 %v964
        %v966 = vlaneseq
        %v967 = vshrl.u32 %v966, 7
        %v968 = vsub.s32 %v965, %v967
        %v969 = vrot.slane %v955, %v968
        %v970 = vcombine.high %v795, 0.0
        %v972 = vunpack.c.l.s4 1983009808
        %v973 = vunpack.c.0.s8 %v972
        %v974 = vlaneseq
        %v975 = vshrl.u32 %v974, 7
        %v976 = vsub.s32 %v973, %v975
        %v977 = vrot.slane %v795, %v976
        %v979 = vunpack.c.l.s4 1983009808
        %v980 = vunpack.c.0.s8 %v979
        %v981 = vlaneseq
        %v982 = vshrl.u32 %v981, 7
        %v983 = vsub.s32 %v980, %v982
        %v984 = vrot.slane %v970, %v983
        %v985 = vcombine.high %v801, 0.0
        %v987 = vunpack.c.l.s4 1983009808
        %v988 = vunpack.c.0.s8 %v987
        %v989 = vlaneseq
        %v990 = vshrl.u32 %v989, 7
        %v991 = vsub.s32 %v988, %v990
        %v992 = vrot.slane %v801, %v991
        %v994 = vunpack.c.l.s4 1983009808
        %v995 = vunpack.c.0.s8 %v994
        %v996 = vlaneseq
        %v997 = vshrl.u32 %v996, 7
        %v998 = vsub.s32 %v995, %v997
        %v999 = vrot.slane %v985, %v998
        %v1000 = vcombine.low %v946, %v962
        %v1001 = vcombine.high %v946, %v962
        %v1003 = vunpack.c.l.s4 1934713408
        %v1004 = vunpack.c.0.s8 %v1003
        %v1005 = vlaneseq
        %v1006 = vshrl.u32 %v1005, 7
        %v1007 = vsub.s32 %v1004, %v1006
        %v1008 = vrot.slane %v1000, %v1007
        %v1010 = vunpack.c.l.s4 1934713408
        %v1011 = vunpack.c.0.s8 %v1010
        %v1012 = vlaneseq
        %v1013 = vshrl.u32 %v1012, 7
        %v1014 = vsub.s32 %v1011, %v1013
        %v1015 = vrot.slane %v1001, %v1014
        %v1016 = vcombine.low %v953, %v969
        %v1017 = vcombine.high %v953, %v969
        %v1019 = vunpack.c.l.s4 1934713408
        %v1020 = vunpack.c.0.s8 %v1019
        %v1021 = vlaneseq
        %v1022 = vshrl.u32 %v1021, 7
        %v1023 = vsub.s32 %v1020, %v1022
        %v1024 = vrot.slane %v1016, %v1023
        %v1026 = vunpack.c.l.s4 1934713408
        %v1027 = vunpack.c.0.s8 %v1026
        %v1028 = vlaneseq
        %v1029 = vshrl.u32 %v1028, 7
        %v1030 = vsub.s32 %v1027, %v1029
        %v1031 = vrot.slane %v1017, %v1030
        %v1032 = vcombine.low %v977, %v992
        %v1033 = vcombine.high %v977, %v992
        %v1035 = vunpack.c.l.s4 1934713408
        %v1036 = vunpack.c.0.s8 %v1035
        %v1037 = vlaneseq
        %v1038 = vshrl.u32 %v1037, 7
        %v1039 = vsub.s32 %v1036, %v1038
        %v1040 = vrot.slane %v1032, %v1039
        %v1042 = vunpack.c.l.s4 1934713408
        %v1043 = vunpack.c.0.s8 %v1042
        %v1044 = vlaneseq
        %v1045 = vshrl.u32 %v1044, 7
        %v1046 = vsub.s32 %v1043, %v1045
        %v1047 = vrot.slane %v1033, %v1046
        %v1048 = vcombine.low %v984, %v999
        %v1049 = vcombine.high %v984, %v999
        %v1051 = vunpack.c.l.s4 1934713408
        %v1052 = vunpack.c.0.s8 %v1051
        %v1053 = vlaneseq
        %v1054 = vshrl.u32 %v1053, 7
        %v1055 = vsub.s32 %v1052, %v1054
        %v1056 = vrot.slane %v1048, %v1055
        %v1058 = vunpack.c.l.s4 1934713408
        %v1059 = vunpack.c.0.s8 %v1058
        %v1060 = vlaneseq
        %v1061 = vshrl.u32 %v1060, 7
        %v1062 = vsub.s32 %v1059, %v1061
        %v1063 = vrot.slane %v1049, %v1062
        %v1064 = vcombine.low %v1008, %v1040
        %v1065 = vcombine.high %v1008, %v1040
        %v1066 = vcombine.low %v1015, %v1047
        %v1067 = vcombine.high %v1015, %v1047
        %v1068 = vcombine.low %v1024, %v1056
        %v1069 = vcombine.high %v1024, %v1056
        %v1070 = vcombine.low %v1031, %v1063
        %v1071 = vcombine.high %v1031, %v1063
        %v1072 = vcombine.low %v930, %v934
        %v1073 = vcombine.high %v930, %v934
        %v1075 = vunpack.c.l.s4 1983009808
        %v1076 = vunpack.c.0.s8 %v1075
        %v1077 = vlaneseq
        %v1078 = vshrl.u32 %v1077, 7
        %v1079 = vsub.s32 %v1076, %v1078
        %v1080 = vrot.slane %v1072, %v1079
        %v1082 = vunpack.c.l.s4 1983009808
        %v1083 = vunpack.c.0.s8 %v1082
        %v1084 = vlaneseq
        %v1085 = vshrl.u32 %v1084, 7
        %v1086 = vsub.s32 %v1083, %v1085
        %v1087 = vrot.slane %v1073, %v1086
        %v1088 = vcombine.low %v932, %v936
        %v1089 = vcombine.high %v932, %v936
        %v1091 = vunpack.c.l.s4 1983009808
        %v1092 = vunpack.c.0.s8 %v1091
        %v1093 = vlaneseq
        %v1094 = vshrl.u32 %v1093, 7
        %v1095 = vsub.s32 %v1092, %v1094
        %v1096 = vrot.slane %v1088, %v1095
        %v1098 = vunpack.c.l.s4 1983009808
        %v1099 = vunpack.c.0.s8 %v1098
        %v1100 = vlaneseq
        %v1101 = vshrl.u32 %v1100, 7
        %v1102 = vsub.s32 %v1099, %v1101
        %v1103 = vrot.slane %v1089, %v1102
        %v1104 = vcombine.low %v1064, %v1068
        %v1105 = vcombine.high %v1064, %v1068
        %v1107 = vunpack.c.l.s4 1983009808
        %v1108 = vunpack.c.0.s8 %v1107
        %v1109 = vlaneseq
        %v1110 = vshrl.u32 %v1109, 7
        %v1111 = vsub.s32 %v1108, %v1110
        %v1112 = vrot.slane %v1104, %v1111
        %v1114 = vunpack.c.l.s4 1983009808
        %v1115 = vunpack.c.0.s8 %v1114
        %v1116 = vlaneseq
        %v1117 = vshrl.u32 %v1116, 7
        %v1118 = vsub.s32 %v1115, %v1117
        %v1119 = vrot.slane %v1105, %v1118
        %v1120 = vcombine.low %v1066, %v1070
        %v1121 = vcombine.high %v1066, %v1070
        %v1123 = vunpack.c.l.s4 1983009808
        %v1124 = vunpack.c.0.s8 %v1123
        %v1125 = vlaneseq
        %v1126 = vshrl.u32 %v1125, 7
        %v1127 = vsub.s32 %v1124, %v1126
        %v1128 = vrot.slane %v1120, %v1127
        %v1130 = vunpack.c.l.s4 1983009808
        %v1131 = vunpack.c.0.s8 %v1130
        %v1132 = vlaneseq
        %v1133 = vshrl.u32 %v1132, 7
        %v1134 = vsub.s32 %v1131, %v1133
        %v1135 = vrot.slane %v1121, %v1134
        %v1136 = vcombine.low %v1080, %v1096
        %v1137 = vcombine.high %v1080, %v1096
        %v1139 = vunpack.c.l.s4 1934713408
        %v1140 = vunpack.c.0.s8 %v1139
        %v1141 = vlaneseq
        %v1142 = vshrl.u32 %v1141, 7
        %v1143 = vsub.s32 %v1140, %v1142
        %v1144 = vrot.slane %v1136, %v1143
        %v1146 = vunpack.c.l.s4 1934713408
        %v1147 = vunpack.c.0.s8 %v1146
        %v1148 = vlaneseq
        %v1149 = vshrl.u32 %v1148, 7
        %v1150 = vsub.s32 %v1147, %v1149
        %v1151 = vrot.slane %v1137, %v1150
        %v1152 = vcombine.low %v1087, %v1103
        %v1154 = vunpack.c.l.s4 1934713408
        %v1155 = vunpack.c.0.s8 %v1154
        %v1156 = vlaneseq
        %v1157 = vshrl.u32 %v1156, 7
        %v1158 = vsub.s32 %v1155, %v1157
        %v1159 = vrot.slane %v1152, %v1158
        %v1160 = vcombine.low %v1112, %v1128
        %v1161 = vcombine.high %v1112, %v1128
        %v1163 = vunpack.c.l.s4 1934713408
        %v1164 = vunpack.c.0.s8 %v1163
        %v1165 = vlaneseq
        %v1166 = vshrl.u32 %v1165, 7
        %v1167 = vsub.s32 %v1164, %v1166
        %v1168 = vrot.slane %v1160, %v1167
        %v1170 = vunpack.c.l.s4 1934713408
        %v1171 = vunpack.c.0.s8 %v1170
        %v1172 = vlaneseq
        %v1173 = vshrl.u32 %v1172, 7
        %v1174 = vsub.s32 %v1171, %v1173
        %v1175 = vrot.slane %v1161, %v1174
        %v1176 = vcombine.low %v1119, %v1135
        %v1178 = vunpack.c.l.s4 1934713408
        %v1179 = vunpack.c.0.s8 %v1178
        %v1180 = vlaneseq
        %v1181 = vshrl.u32 %v1180, 7
        %v1182 = vsub.s32 %v1179, %v1181
        %v1183 = vrot.slane %v1176, %v1182
        %v1184 = vcombine.low %v1144, %v1168
        %v1185 = vcombine.high %v1144, %v1168
        %v1186 = vcombine.low %v1151, %v1175
        %v1187 = vcombine.high %v1151, %v1175
        %v1188 = vcombine.low %v1159, %v1183
        %v1189 = vcombine.high %v1159, %v1183
        %v1190 = vcombine.low %v931, %v935
        %v1191 = vcombine.high %v931, %v935
        %v1193 = vunpack.c.l.s4 1983009808
        %v1194 = vunpack.c.0.s8 %v1193
        %v1195 = vlaneseq
        %v1196 = vshrl.u32 %v1195, 7
        %v1197 = vsub.s32 %v1194, %v1196
        %v1198 = vrot.slane %v1190, %v1197
        %v1200 = vunpack.c.l.s4 1983009808
        %v1201 = vunpack.c.0.s8 %v1200
        %v1202 = vlaneseq
        %v1203 = vshrl.u32 %v1202, 7
        %v1204 = vsub.s32 %v1201, %v1203
        %v1205 = vrot.slane %v1191, %v1204
        %v1206 = vcombine.low %v933, %v937
        %v1207 = vcombine.high %v933, %v937
        %v1209 = vunpack.c.l.s4 1983009808
        %v1210 = vunpack.c.0.s8 %v1209
        %v1211 = vlaneseq
        %v1212 = vshrl.u32 %v1211, 7
        %v1213 = vsub.s32 %v1210, %v1212
        %v1214 = vrot.slane %v1206, %v1213
        %v1216 = vunpack.c.l.s4 1983009808
        %v1217 = vunpack.c.0.s8 %v1216
        %v1218 = vlaneseq
        %v1219 = vshrl.u32 %v1218, 7
        %v1220 = vsub.s32 %v1217, %v1219
        %v1221 = vrot.slane %v1207, %v1220
        %v1222 = vcombine.low %v1065, %v1069
        %v1223 = vcombine.high %v1065, %v1069
        %v1225 = vunpack.c.l.s4 1983009808
        %v1226 = vunpack.c.0.s8 %v1225
        %v1227 = vlaneseq
        %v1228 = vshrl.u32 %v1227, 7
        %v1229 = vsub.s32 %v1226, %v1228
        %v1230 = vrot.slane %v1222, %v1229
        %v1232 = vunpack.c.l.s4 1983009808
        %v1233 = vunpack.c.0.s8 %v1232
        %v1234 = vlaneseq
        %v1235 = vshrl.u32 %v1234, 7
        %v1236 = vsub.s32 %v1233, %v1235
        %v1237 = vrot.slane %v1223, %v1236
        %v1238 = vcombine.low %v1067, %v1071
        %v1239 = vcombine.high %v1067, %v1071
        %v1241 = vunpack.c.l.s4 1983009808
        %v1242 = vunpack.c.0.s8 %v1241
        %v1243 = vlaneseq
        %v1244 = vshrl.u32 %v1243, 7
        %v1245 = vsub.s32 %v1242, %v1244
        %v1246 = vrot.slane %v1238, %v1245
        %v1248 = vunpack.c.l.s4 1983009808
        %v1249 = vunpack.c.0.s8 %v1248
        %v1250 = vlaneseq
        %v1251 = vshrl.u32 %v1250, 7
        %v1252 = vsub.s32 %v1249, %v1251
        %v1253 = vrot.slane %v1239, %v1252
        %v1254 = vcombine.low %v1198, %v1214
        %v1255 = vcombine.high %v1198, %v1214
        %v1257 = vunpack.c.l.s4 1934713408
        %v1258 = vunpack.c.0.s8 %v1257
        %v1259 = vlaneseq
        %v1260 = vshrl.u32 %v1259, 7
        %v1261 = vsub.s32 %v1258, %v1260
        %v1262 = vrot.slane %v1254, %v1261
        %v1264 = vunpack.c.l.s4 1934713408
        %v1265 = vunpack.c.0.s8 %v1264
        %v1266 = vlaneseq
        %v1267 = vshrl.u32 %v1266, 7
        %v1268 = vsub.s32 %v1265, %v1267
        %v1269 = vrot.slane %v1255, %v1268
        %v1270 = vcombine.low %v1205, %v1221
        %v1272 = vunpack.c.l.s4 1934713408
        %v1273 = vunpack.c.0.s8 %v1272
        %v1274 = vlaneseq
        %v1275 = vshrl.u32 %v1274, 7
        %v1276 = vsub.s32 %v1273, %v1275
        %v1277 = vrot.slane %v1270, %v1276
        %v1278 = vcombine.low %v1230, %v1246
        %v1279 = vcombine.high %v1230, %v1246
        %v1281 = vunpack.c.l.s4 1934713408
        %v1282 = vunpack.c.0.s8 %v1281
        %v1283 = vlaneseq
        %v1284 = vshrl.u32 %v1283, 7
        %v1285 = vsub.s32 %v1282, %v1284
        %v1286 = vrot.slane %v1278, %v1285
        %v1288 = vunpack.c.l.s4 1934713408
        %v1289 = vunpack.c.0.s8 %v1288
        %v1290 = vlaneseq
        %v1291 = vshrl.u32 %v1290, 7
        %v1292 = vsub.s32 %v1289, %v1291
        %v1293 = vrot.slane %v1279, %v1292
        %v1294 = vcombine.low %v1237, %v1253
        %v1296 = vunpack.c.l.s4 1934713408
        %v1297 = vunpack.c.0.s8 %v1296
        %v1298 = vlaneseq
        %v1299 = vshrl.u32 %v1298, 7
        %v1300 = vsub.s32 %v1297, %v1299
        %v1301 = vrot.slane %v1294, %v1300
        %v1302 = vcombine.low %v1262, %v1286
        %v1303 = vcombine.high %v1262, %v1286
        %v1304 = vcombine.low %v1269, %v1293
        %v1305 = vcombine.high %v1269, %v1293
        %v1306 = vcombine.low %v1277, %v1301
        %v1307 = vcombine.high %v1277, %v1301
        %v1308 = vpack.c.bf16 %v1184, %v1184
        %v1309 = vpack.c.bf16 %v1185, %v1185
        %v1310 = vpack.c.bf16 %v1302, %v1302
        %v1311 = vpack.c.bf16 %v1303, %v1303
        %v1312 = vpack.c.bf16 %v1186, %v1186
        %v1313 = vpack.c.bf16 %v1187, %v1187
        %v1314 = vpack.c.bf16 %v1304, %v1304
        %v1315 = vpack.c.bf16 %v1305, %v1305
        %v1316 = vpack.c.bf16 %v1188, %v1188
        %v1317 = vpack.c.bf16 %v1189, %v1189
        %v1318 = vpack.c.bf16 %v1306, %v1306
        %v1319 = vpack.c.bf16 %v1307, %v1307
        %vm1320 = vcmask 130048
        %v1322 = vsel %vm1320, %v1308, 0
        %v1325 = vsel %vm1320, %v1312, 0
        %1327 = vmatprep.subr.bf16.mxu0 0
        %1328 = vmatpush1.bf16.xpose.msra.mxu0 %v1325
        %1329 = vmatprep.subr.bf16.mxu0 0
        %1330 = vmatpush1.bf16.xpose.msra.mxu0 0
        %1331 = vmatprep.subr.bf16.mxu0 0
        %1332 = vmatpush1.bf16.xpose.msra.mxu0 0
        %1333 = vmatprep.subr.bf16.mxu0 0
        %1334 = vmatpush1.bf16.xpose.msra.mxu0 0
        %1335 = vmatprep.subr.bf16.mxu0 0
        %1336 = vmatpush1.bf16.xpose.msra.mxu0 0
        %1337 = vmatprep.subr.bf16.mxu0 0
        %1338 = vmatpush1.bf16.xpose.msra.mxu0 0
        %1339 = vmatprep.subr.bf16.mxu0 0
        %1340 = vmatpush1.bf16.xpose.msra.mxu0 0
        %1341 = vmatprep.subr.bf16.mxu0 0
        %1342 = vmatpush1.bf16.xpose.msra.mxu0 0
        %1343 = vmatprep.subr.bf16.mxu0 0
        %1344 = vmatpush1.bf16.xpose.msra.mxu0 0
        %1345 = vmatprep.subr.bf16.mxu0 0
        %1346 = vmatpush1.bf16.xpose.msra.mxu0 0
        %1347 = vmatprep.subr.bf16.mxu0 0
        %1348 = vmatpush1.bf16.xpose.msra.mxu0 0
        %1349 = vmatprep.subr.bf16.mxu0 0
        %1350 = vmatpush1.bf16.xpose.msra.mxu0 0
        %1351 = vmatprep.subr.bf16.mxu0 0
        %1352 = vmatpush1.bf16.xpose.msra.mxu0 0
        %1353 = vmatprep.subr.bf16.mxu0 0
        %1354 = vmatpush1.bf16.xpose.msra.mxu0 0
        %1355 = vmatprep.subr.bf16.mxu0 0
        %1356 = vmatpush1.bf16.xpose.msra.mxu0 0
        %1357 = vmatprep.subr.bf16.mxu0 0
        %1358 = vmatpush1.bf16.xpose.msra.mxu0 0
        %1359 = vmatprep.mubr.bf16.mxu0 0
        %1360 = vmatmul.mubr.bf16.gmra.mrb[0].mxu0 %v1322
        %v1361 = vpop.f32.mrb[0].mxu0
        %v1362 = vadd.f32 0.0, %v1361
        %v1363 = vpop.f32.mrb[0].mxu0
        %v1364 = vpop.f32.mrb[0].mxu0
        %v1365 = vpop.f32.mrb[0].mxu0
        %1366 = vdwg.mxu0
        %v1368 = vsel %vm1320, %v1309, 0
        %v1371 = vsel %vm1320, %v1313, 0
        %1373 = vmatprep.subr.bf16.mxu0 0
        %1374 = vmatpush1.bf16.xpose.msra.mxu0 %v1371
        %1375 = vmatprep.subr.bf16.mxu0 0
        %1376 = vmatpush1.bf16.xpose.msra.mxu0 0
        %1377 = vmatprep.subr.bf16.mxu0 0
        %1378 = vmatpush1.bf16.xpose.msra.mxu0 0
        %1379 = vmatprep.subr.bf16.mxu0 0
        %1380 = vmatpush1.bf16.xpose.msra.mxu0 0
        %1381 = vmatprep.subr.bf16.mxu0 0
        %1382 = vmatpush1.bf16.xpose.msra.mxu0 0
        %1383 = vmatprep.subr.bf16.mxu0 0
        %1384 = vmatpush1.bf16.xpose.msra.mxu0 0
        %1385 = vmatprep.subr.bf16.mxu0 0
        %1386 = vmatpush1.bf16.xpose.msra.mxu0 0
        %1387 = vmatprep.subr.bf16.mxu0 0
        %1388 = vmatpush1.bf16.xpose.msra.mxu0 0
        %1389 = vmatprep.subr.bf16.mxu0 0
        %1390 = vmatpush1.bf16.xpose.msra.mxu0 0
        %1391 = vmatprep.subr.bf16.mxu0 0
        %1392 = vmatpush1.bf16.xpose.msra.mxu0 0
        %1393 = vmatprep.subr.bf16.mxu0 0
        %1394 = vmatpush1.bf16.xpose.msra.mxu0 0
        %1395 = vmatprep.subr.bf16.mxu0 0
        %1396 = vmatpush1.bf16.xpose.msra.mxu0 0
        %1397 = vmatprep.subr.bf16.mxu0 0
        %1398 = vmatpush1.bf16.xpose.msra.mxu0 0
        %1399 = vmatprep.subr.bf16.mxu0 0
        %1400 = vmatpush1.bf16.xpose.msra.mxu0 0
        %1401 = vmatprep.subr.bf16.mxu0 0
        %1402 = vmatpush1.bf16.xpose.msra.mxu0 0
        %1403 = vmatprep.subr.bf16.mxu0 0
        %1404 = vmatpush1.bf16.xpose.msra.mxu0 0
        %1405 = vmatprep.mubr.bf16.mxu0 0
        %1406 = vmatmul.mubr.bf16.gmra.mrb[0].mxu0 %v1368
        %v1407 = vpop.f32.mrb[0].mxu0
        %v1408 = vadd.f32 0.0, %v1407
        %v1409 = vpop.f32.mrb[0].mxu0
        %v1410 = vpop.f32.mrb[0].mxu0
        %v1411 = vpop.f32.mrb[0].mxu0
        %1412 = vdwg.mxu0
        %v1414 = vsel %vm1320, %v1310, 0
        %v1417 = vsel %vm1320, %v1314, 0
        %1419 = vmatprep.subr.bf16.mxu0 0
        %1420 = vmatpush1.bf16.xpose.msra.mxu0 %v1417
        %1421 = vmatprep.subr.bf16.mxu0 0
        %1422 = vmatpush1.bf16.xpose.msra.mxu0 0
        %1423 = vmatprep.subr.bf16.mxu0 0
        %1424 = vmatpush1.bf16.xpose.msra.mxu0 0
        %1425 = vmatprep.subr.bf16.mxu0 0
        %1426 = vmatpush1.bf16.xpose.msra.mxu0 0
        %1427 = vmatprep.subr.bf16.mxu0 0
        %1428 = vmatpush1.bf16.xpose.msra.mxu0 0
        %1429 = vmatprep.subr.bf16.mxu0 0
        %1430 = vmatpush1.bf16.xpose.msra.mxu0 0
        %1431 = vmatprep.subr.bf16.mxu0 0
        %1432 = vmatpush1.bf16.xpose.msra.mxu0 0
        %1433 = vmatprep.subr.bf16.mxu0 0
        %1434 = vmatpush1.bf16.xpose.msra.mxu0 0
        %1435 = vmatprep.subr.bf16.mxu0 0
        %1436 = vmatpush1.bf16.xpose.msra.mxu0 0
        %1437 = vmatprep.subr.bf16.mxu0 0
        %1438 = vmatpush1.bf16.xpose.msra.mxu0 0
        %1439 = vmatprep.subr.bf16.mxu0 0
        %1440 = vmatpush1.bf16.xpose.msra.mxu0 0
        %1441 = vmatprep.subr.bf16.mxu0 0
        %1442 = vmatpush1.bf16.xpose.msra.mxu0 0
        %1443 = vmatprep.subr.bf16.mxu0 0
        %1444 = vmatpush1.bf16.xpose.msra.mxu0 0
        %1445 = vmatprep.subr.bf16.mxu0 0
        %1446 = vmatpush1.bf16.xpose.msra.mxu0 0
        %1447 = vmatprep.subr.bf16.mxu0 0
        %1448 = vmatpush1.bf16.xpose.msra.mxu0 0
        %1449 = vmatprep.subr.bf16.mxu0 0
        %1450 = vmatpush1.bf16.xpose.msra.mxu0 0
        %1451 = vmatprep.mubr.bf16.mxu0 0
        %1452 = vmatmul.mubr.bf16.gmra.mrb[0].mxu0 %v1414
        %v1453 = vpop.f32.mrb[0].mxu0
        %v1454 = vadd.f32 0.0, %v1453
        %v1455 = vpop.f32.mrb[0].mxu0
        %v1456 = vpop.f32.mrb[0].mxu0
        %v1457 = vpop.f32.mrb[0].mxu0
        %1458 = vdwg.mxu0
        %v1460 = vsel %vm1320, %v1311, 0
        %v1463 = vsel %vm1320, %v1315, 0
        %1465 = vmatprep.subr.bf16.mxu0 0
        %1466 = vmatpush1.bf16.xpose.msra.mxu0 %v1463
        %1467 = vmatprep.subr.bf16.mxu0 0
        %1468 = vmatpush1.bf16.xpose.msra.mxu0 0
        %1469 = vmatprep.subr.bf16.mxu0 0
        %1470 = vmatpush1.bf16.xpose.msra.mxu0 0
        %1471 = vmatprep.subr.bf16.mxu0 0
        %1472 = vmatpush1.bf16.xpose.msra.mxu0 0
        %1473 = vmatprep.subr.bf16.mxu0 0
        %1474 = vmatpush1.bf16.xpose.msra.mxu0 0
        %1475 = vmatprep.subr.bf16.mxu0 0
        %1476 = vmatpush1.bf16.xpose.msra.mxu0 0
        %1477 = vmatprep.subr.bf16.mxu0 0
        %1478 = vmatpush1.bf16.xpose.msra.mxu0 0
        %1479 = vmatprep.subr.bf16.mxu0 0
        %1480 = vmatpush1.bf16.xpose.msra.mxu0 0
        %1481 = vmatprep.subr.bf16.mxu0 0
        %1482 = vmatpush1.bf16.xpose.msra.mxu0 0
        %1483 = vmatprep.subr.bf16.mxu0 0
        %1484 = vmatpush1.bf16.xpose.msra.mxu0 0
        %1485 = vmatprep.subr.bf16.mxu0 0
        %1486 = vmatpush1.bf16.xpose.msra.mxu0 0
        %1487 = vmatprep.subr.bf16.mxu0 0
        %1488 = vmatpush1.bf16.xpose.msra.mxu0 0
        %1489 = vmatprep.subr.bf16.mxu0 0
        %1490 = vmatpush1.bf16.xpose.msra.mxu0 0
        %1491 = vmatprep.subr.bf16.mxu0 0
        %1492 = vmatpush1.bf16.xpose.msra.mxu0 0
        %1493 = vmatprep.subr.bf16.mxu0 0
        %1494 = vmatpush1.bf16.xpose.msra.mxu0 0
        %1495 = vmatprep.subr.bf16.mxu0 0
        %1496 = vmatpush1.bf16.xpose.msra.mxu0 0
        %1497 = vmatprep.mubr.bf16.mxu0 0
        %1498 = vmatmul.mubr.bf16.gmra.mrb[0].mxu0 %v1460
        %v1499 = vpop.f32.mrb[0].mxu0
        %v1500 = vadd.f32 0.0, %v1499
        %v1501 = vpop.f32.mrb[0].mxu0
        %v1502 = vpop.f32.mrb[0].mxu0
        %v1503 = vpop.f32.mrb[0].mxu0
        %1504 = vdwg.mxu0
        %v1505 = vmul.f32 %v1362, 0.25
        %v1506 = vmul.f32 %v1408, 0.25
        %v1507 = vmul.f32 %v1454, 0.25
        %v1508 = vmul.f32 %v1500, 0.25
        %v1509 = vadd.f32 %v1505, %v677
        %v1510 = vadd.f32 %v1506, %v677
        %v1511 = vadd.f32 %v1507, %v677
        %v1512 = vadd.f32 %v1508, %v677
        %vm1513 = vcmask 64512
        %v1514 = vsel %vm1513, %v1509, -inf
        %1515 = vmax.xlane.f32.xlu0 %v1514
        %v1516 = vpop.xlane.xlu0 %1515
        %v1517 = vsel %vm1513, %v1510, -inf
        %1518 = vmax.xlane.f32.xlu0 %v1517
        %v1519 = vpop.xlane.xlu0 %1518
        %v1520 = vsel %vm1513, %v1511, -inf
        %1521 = vmax.xlane.f32.xlu0 %v1520
        %v1522 = vpop.xlane.xlu0 %1521
        %v1523 = vsel %vm1513, %v1512, -inf
        %1524 = vmax.xlane.f32.xlu0 %v1523
        %v1525 = vpop.xlane.xlu0 %1524
        %v1526 = vsub.f32 %v1509, %v1516
        %v1527 = vsub.f32 %v1510, %v1519
        %v1528 = vsub.f32 %v1511, %v1522
        %v1529 = vsub.f32 %v1512, %v1525
        %v1530 = vmul.f32 %v1526, 1.442695
        %v1531 = vpow.pop %v1530
        %v1532 = vmul.f32 %v1527, 1.442695
        %v1533 = vpow.pop %v1532
        %v1534 = vmul.f32 %v1528, 1.442695
        %v1535 = vpow.pop %v1534
        %v1536 = vmul.f32 %v1529, 1.442695
        %v1537 = vpow.pop %v1536
        %v1538 = vsel %vm1513, %v1531, 0.0
        %1539 = vadd.xlane.f32.xlu0 %v1538
        %v1540 = vpop.xlane.xlu0 %1539
        %v1541 = vsel %vm1513, %v1533, 0.0
        %1542 = vadd.xlane.f32.xlu0 %v1541
        %v1543 = vpop.xlane.xlu0 %1542
        %v1544 = vsel %vm1513, %v1535, 0.0
        %1545 = vadd.xlane.f32.xlu0 %v1544
        %v1546 = vpop.xlane.xlu0 %1545
        %v1547 = vsel %vm1513, %v1537, 0.0
        %1548 = vadd.xlane.f32.xlu0 %v1547
        %v1549 = vpop.xlane.xlu0 %1548
        %v1550 = vpack.c.bf16 %v1531, %v1531
        %v1551 = vpack.c.bf16 %v1533, %v1533
        %v1552 = vpack.c.bf16 %v1535, %v1535
        %v1553 = vpack.c.bf16 %v1537, %v1537
        %v1555 = vsel %vm1513, %v1550, 0
        %vm1557 = vcmask 1043456
        %v1559 = vsel %vm1557, %v1316, 0
        %1561 = vmatprep.subr.bf16.mxu0 0
        %1562 = vmatpush1.bf16.msra.mxu0 %v1559
        %1563 = vmatprep.subr.bf16.mxu0 0
        %1564 = vmatpush1.bf16.msra.mxu0 0
        %1565 = vmatprep.subr.bf16.mxu0 0
        %1566 = vmatpush1.bf16.msra.mxu0 0
        %1567 = vmatprep.subr.bf16.mxu0 0
        %1568 = vmatpush1.bf16.msra.mxu0 0
        %1569 = vmatprep.subr.bf16.mxu0 0
        %1570 = vmatpush1.bf16.msra.mxu0 0
        %1571 = vmatprep.subr.bf16.mxu0 0
        %1572 = vmatpush1.bf16.msra.mxu0 0
        %1573 = vmatprep.subr.bf16.mxu0 0
        %1574 = vmatpush1.bf16.msra.mxu0 0
        %1575 = vmatprep.subr.bf16.mxu0 0
        %1576 = vmatpush1.bf16.msra.mxu0 0
        %1577 = vmatprep.subr.bf16.mxu0 0
        %1578 = vmatpush1.bf16.msra.mxu0 0
        %1579 = vmatprep.subr.bf16.mxu0 0
        %1580 = vmatpush1.bf16.msra.mxu0 0
        %1581 = vmatprep.subr.bf16.mxu0 0
        %1582 = vmatpush1.bf16.msra.mxu0 0
        %1583 = vmatprep.subr.bf16.mxu0 0
        %1584 = vmatpush1.bf16.msra.mxu0 0
        %1585 = vmatprep.subr.bf16.mxu0 0
        %1586 = vmatpush1.bf16.msra.mxu0 0
        %1587 = vmatprep.subr.bf16.mxu0 0
        %1588 = vmatpush1.bf16.msra.mxu0 0
        %1589 = vmatprep.subr.bf16.mxu0 0
        %1590 = vmatpush1.bf16.msra.mxu0 0
        %1591 = vmatprep.subr.bf16.mxu0 0
        %1592 = vmatpush1.bf16.msra.mxu0 0
        %1593 = vmatprep.mubr.bf16.mxu0 0
        %1594 = vmatmul.mubr.bf16.gmra.mrb[0].mxu0 %v1555
        %v1595 = vpop.f32.mrb[0].mxu0
        %v1596 = vadd.f32 0.0, %v1595
        %v1597 = vpop.f32.mrb[0].mxu0
        %v1598 = vpop.f32.mrb[0].mxu0
        %v1599 = vpop.f32.mrb[0].mxu0
        %1600 = vdwg.mxu0
        %v1602 = vsel %vm1513, %v1551, 0
        %v1605 = vsel %vm1557, %v1317, 0
        %1607 = vmatprep.subr.bf16.mxu0 0
        %1608 = vmatpush1.bf16.msra.mxu0 %v1605
        %1609 = vmatprep.subr.bf16.mxu0 0
        %1610 = vmatpush1.bf16.msra.mxu0 0
        %1611 = vmatprep.subr.bf16.mxu0 0
        %1612 = vmatpush1.bf16.msra.mxu0 0
        %1613 = vmatprep.subr.bf16.mxu0 0
        %1614 = vmatpush1.bf16.msra.mxu0 0
        %1615 = vmatprep.subr.bf16.mxu0 0
        %1616 = vmatpush1.bf16.msra.mxu0 0
        %1617 = vmatprep.subr.bf16.mxu0 0
        %1618 = vmatpush1.bf16.msra.mxu0 0
        %1619 = vmatprep.subr.bf16.mxu0 0
        %1620 = vmatpush1.bf16.msra.mxu0 0
        %1621 = vmatprep.subr.bf16.mxu0 0
        %1622 = vmatpush1.bf16.msra.mxu0 0
        %1623 = vmatprep.subr.bf16.mxu0 0
        %1624 = vmatpush1.bf16.msra.mxu0 0
        %1625 = vmatprep.subr.bf16.mxu0 0
        %1626 = vmatpush1.bf16.msra.mxu0 0
        %1627 = vmatprep.subr.bf16.mxu0 0
        %1628 = vmatpush1.bf16.msra.mxu0 0
        %1629 = vmatprep.subr.bf16.mxu0 0
        %1630 = vmatpush1.bf16.msra.mxu0 0
        %1631 = vmatprep.subr.bf16.mxu0 0
        %1632 = vmatpush1.bf16.msra.mxu0 0
        %1633 = vmatprep.subr.bf16.mxu0 0
        %1634 = vmatpush1.bf16.msra.mxu0 0
        %1635 = vmatprep.subr.bf16.mxu0 0
        %1636 = vmatpush1.bf16.msra.mxu0 0
        %1637 = vmatprep.subr.bf16.mxu0 0
        %1638 = vmatpush1.bf16.msra.mxu0 0
        %1639 = vmatprep.mubr.bf16.mxu0 0
        %1640 = vmatmul.mubr.bf16.gmra.mrb[0].mxu0 %v1602
        %v1641 = vpop.f32.mrb[0].mxu0
        %v1642 = vadd.f32 0.0, %v1641
        %v1643 = vpop.f32.mrb[0].mxu0
        %v1644 = vpop.f32.mrb[0].mxu0
        %v1645 = vpop.f32.mrb[0].mxu0
        %1646 = vdwg.mxu0
        %v1648 = vsel %vm1513, %v1552, 0
        %v1651 = vsel %vm1557, %v1318, 0
        %1653 = vmatprep.subr.bf16.mxu0 0
        %1654 = vmatpush1.bf16.msra.mxu0 %v1651
        %1655 = vmatprep.subr.bf16.mxu0 0
        %1656 = vmatpush1.bf16.msra.mxu0 0
        %1657 = vmatprep.subr.bf16.mxu0 0
        %1658 = vmatpush1.bf16.msra.mxu0 0
        %1659 = vmatprep.subr.bf16.mxu0 0
        %1660 = vmatpush1.bf16.msra.mxu0 0
        %1661 = vmatprep.subr.bf16.mxu0 0
        %1662 = vmatpush1.bf16.msra.mxu0 0
        %1663 = vmatprep.subr.bf16.mxu0 0
        %1664 = vmatpush1.bf16.msra.mxu0 0
        %1665 = vmatprep.subr.bf16.mxu0 0
        %1666 = vmatpush1.bf16.msra.mxu0 0
        %1667 = vmatprep.subr.bf16.mxu0 0
        %1668 = vmatpush1.bf16.msra.mxu0 0
        %1669 = vmatprep.subr.bf16.mxu0 0
        %1670 = vmatpush1.bf16.msra.mxu0 0
        %1671 = vmatprep.subr.bf16.mxu0 0
        %1672 = vmatpush1.bf16.msra.mxu0 0
        %1673 = vmatprep.subr.bf16.mxu0 0
        %1674 = vmatpush1.bf16.msra.mxu0 0
        %1675 = vmatprep.subr.bf16.mxu0 0
        %1676 = vmatpush1.bf16.msra.mxu0 0
        %1677 = vmatprep.subr.bf16.mxu0 0
        %1678 = vmatpush1.bf16.msra.mxu0 0
        %1679 = vmatprep.subr.bf16.mxu0 0
        %1680 = vmatpush1.bf16.msra.mxu0 0
        %1681 = vmatprep.subr.bf16.mxu0 0
        %1682 = vmatpush1.bf16.msra.mxu0 0
        %1683 = vmatprep.subr.bf16.mxu0 0
        %1684 = vmatpush1.bf16.msra.mxu0 0
        %1685 = vmatprep.mubr.bf16.mxu0 0
        %1686 = vmatmul.mubr.bf16.gmra.mrb[0].mxu0 %v1648
        %v1687 = vpop.f32.mrb[0].mxu0
        %v1688 = vadd.f32 0.0, %v1687
        %v1689 = vpop.f32.mrb[0].mxu0
        %v1690 = vpop.f32.mrb[0].mxu0
        %v1691 = vpop.f32.mrb[0].mxu0
        %1692 = vdwg.mxu0
        %v1694 = vsel %vm1513, %v1553, 0
        %v1697 = vsel %vm1557, %v1319, 0
        %1699 = vmatprep.subr.bf16.mxu0 0
        %1700 = vmatpush1.bf16.msra.mxu0 %v1697
        %1701 = vmatprep.subr.bf16.mxu0 0
        %1702 = vmatpush1.bf16.msra.mxu0 0
        %1703 = vmatprep.subr.bf16.mxu0 0
        %1704 = vmatpush1.bf16.msra.mxu0 0
        %1705 = vmatprep.subr.bf16.mxu0 0
        %1706 = vmatpush1.bf16.msra.mxu0 0
        %1707 = vmatprep.subr.bf16.mxu0 0
        %1708 = vmatpush1.bf16.msra.mxu0 0
        %1709 = vmatprep.subr.bf16.mxu0 0
        %1710 = vmatpush1.bf16.msra.mxu0 0
        %1711 = vmatprep.subr.bf16.mxu0 0
        %1712 = vmatpush1.bf16.msra.mxu0 0
        %1713 = vmatprep.subr.bf16.mxu0 0
        %1714 = vmatpush1.bf16.msra.mxu0 0
        %1715 = vmatprep.subr.bf16.mxu0 0
        %1716 = vmatpush1.bf16.msra.mxu0 0
        %1717 = vmatprep.subr.bf16.mxu0 0
        %1718 = vmatpush1.bf16.msra.mxu0 0
        %1719 = vmatprep.subr.bf16.mxu0 0
        %1720 = vmatpush1.bf16.msra.mxu0 0
        %1721 = vmatprep.subr.bf16.mxu0 0
        %1722 = vmatpush1.bf16.msra.mxu0 0
        %1723 = vmatprep.subr.bf16.mxu0 0
        %1724 = vmatpush1.bf16.msra.mxu0 0
        %1725 = vmatprep.subr.bf16.mxu0 0
        %1726 = vmatpush1.bf16.msra.mxu0 0
        %1727 = vmatprep.subr.bf16.mxu0 0
        %1728 = vmatpush1.bf16.msra.mxu0 0
        %1729 = vmatprep.subr.bf16.mxu0 0
        %1730 = vmatpush1.bf16.msra.mxu0 0
        %1731 = vmatprep.mubr.bf16.mxu0 0
        %1732 = vmatmul.mubr.bf16.gmra.mrb[0].mxu0 %v1694
        %v1733 = vpop.f32.mrb[0].mxu0
        %v1734 = vadd.f32 0.0, %v1733
        %v1735 = vpop.f32.mrb[0].mxu0
        %v1736 = vpop.f32.mrb[0].mxu0
        %v1737 = vpop.f32.mrb[0].mxu0
        %1738 = vdwg.mxu0
        %v1739 = vrcp.pop %v1540
        %v1740 = vrcp.pop %v1543
        %v1741 = vrcp.pop %v1546
        %v1742 = vrcp.pop %v1549
        %v1743 = vmul.f32 %v1596, %v1739
        %v1744 = vmul.f32 %v1642, %v1740
        %v1745 = vmul.f32 %v1688, %v1741
        %v1746 = vmul.f32 %v1734, %v1742
        %v1747 = vcombine.high %v1743, 0.0
        %v1749 = vunpack.c.l.s4 1983009808
        %v1750 = vunpack.c.0.s8 %v1749
        %v1751 = vlaneseq
        %v1752 = vshrl.u32 %v1751, 7
        %v1753 = vsub.s32 %v1750, %v1752
        %v1754 = vrot.slane %v1743, %v1753
        %v1756 = vunpack.c.l.s4 1983009808
        %v1757 = vunpack.c.0.s8 %v1756
        %v1758 = vlaneseq
        %v1759 = vshrl.u32 %v1758, 7
        %v1760 = vsub.s32 %v1757, %v1759
        %v1761 = vrot.slane %v1747, %v1760
        %v1762 = vcombine.high %v1744, 0.0
        %v1764 = vunpack.c.l.s4 1983009808
        %v1765 = vunpack.c.0.s8 %v1764
        %v1766 = vlaneseq
        %v1767 = vshrl.u32 %v1766, 7
        %v1768 = vsub.s32 %v1765, %v1767
        %v1769 = vrot.slane %v1744, %v1768
        %v1771 = vunpack.c.l.s4 1983009808
        %v1772 = vunpack.c.0.s8 %v1771
        %v1773 = vlaneseq
        %v1774 = vshrl.u32 %v1773, 7
        %v1775 = vsub.s32 %v1772, %v1774
        %v1776 = vrot.slane %v1762, %v1775
        %v1777 = vcombine.low %v1754, %v1769
        %v1778 = vcombine.high %v1754, %v1769
        %v1780 = vunpack.c.l.s4 1934713408
        %v1781 = vunpack.c.0.s8 %v1780
        %v1782 = vlaneseq
        %v1783 = vshrl.u32 %v1782, 7
        %v1784 = vsub.s32 %v1781, %v1783
        %v1785 = vrot.slane %v1777, %v1784
        %v1787 = vunpack.c.l.s4 1934713408
        %v1788 = vunpack.c.0.s8 %v1787
        %v1789 = vlaneseq
        %v1790 = vshrl.u32 %v1789, 7
        %v1791 = vsub.s32 %v1788, %v1790
        %v1792 = vrot.slane %v1778, %v1791
        %v1793 = vcombine.low %v1761, %v1776
        %v1794 = vcombine.high %v1761, %v1776
        %v1796 = vunpack.c.l.s4 1934713408
        %v1797 = vunpack.c.0.s8 %v1796
        %v1798 = vlaneseq
        %v1799 = vshrl.u32 %v1798, 7
        %v1800 = vsub.s32 %v1797, %v1799
        %v1801 = vrot.slane %v1793, %v1800
        %v1803 = vunpack.c.l.s4 1934713408
        %v1804 = vunpack.c.0.s8 %v1803
        %v1805 = vlaneseq
        %v1806 = vshrl.u32 %v1805, 7
        %v1807 = vsub.s32 %v1804, %v1806
        %v1808 = vrot.slane %v1794, %v1807
        %v1809 = vcombine.high %v1785, 0.0
        %v1810 = vcombine.high %v1792, 0.0
        %v1811 = vcombine.high %v1801, 0.0
        %v1812 = vcombine.high %v1808, 0.0
        %v1813 = vcombine.high %v1745, 0.0
        %v1815 = vunpack.c.l.s4 1983009808
        %v1816 = vunpack.c.0.s8 %v1815
        %v1817 = vlaneseq
        %v1818 = vshrl.u32 %v1817, 7
        %v1819 = vsub.s32 %v1816, %v1818
        %v1820 = vrot.slane %v1745, %v1819
        %v1822 = vunpack.c.l.s4 1983009808
        %v1823 = vunpack.c.0.s8 %v1822
        %v1824 = vlaneseq
        %v1825 = vshrl.u32 %v1824, 7
        %v1826 = vsub.s32 %v1823, %v1825
        %v1827 = vrot.slane %v1813, %v1826
        %v1828 = vcombine.high %v1746, 0.0
        %v1830 = vunpack.c.l.s4 1983009808
        %v1831 = vunpack.c.0.s8 %v1830
        %v1832 = vlaneseq
        %v1833 = vshrl.u32 %v1832, 7
        %v1834 = vsub.s32 %v1831, %v1833
        %v1835 = vrot.slane %v1746, %v1834
        %v1837 = vunpack.c.l.s4 1983009808
        %v1838 = vunpack.c.0.s8 %v1837
        %v1839 = vlaneseq
        %v1840 = vshrl.u32 %v1839, 7
        %v1841 = vsub.s32 %v1838, %v1840
        %v1842 = vrot.slane %v1828, %v1841
        %v1843 = vcombine.low %v1820, %v1835
        %v1844 = vcombine.high %v1820, %v1835
        %v1846 = vunpack.c.l.s4 1934713408
        %v1847 = vunpack.c.0.s8 %v1846
        %v1848 = vlaneseq
        %v1849 = vshrl.u32 %v1848, 7
        %v1850 = vsub.s32 %v1847, %v1849
        %v1851 = vrot.slane %v1843, %v1850
        %v1853 = vunpack.c.l.s4 1934713408
        %v1854 = vunpack.c.0.s8 %v1853
        %v1855 = vlaneseq
        %v1856 = vshrl.u32 %v1855, 7
        %v1857 = vsub.s32 %v1854, %v1856
        %v1858 = vrot.slane %v1844, %v1857
        %v1859 = vcombine.low %v1827, %v1842
        %v1860 = vcombine.high %v1827, %v1842
        %v1862 = vunpack.c.l.s4 1934713408
        %v1863 = vunpack.c.0.s8 %v1862
        %v1864 = vlaneseq
        %v1865 = vshrl.u32 %v1864, 7
        %v1866 = vsub.s32 %v1863, %v1865
        %v1867 = vrot.slane %v1859, %v1866
        %v1869 = vunpack.c.l.s4 1934713408
        %v1870 = vunpack.c.0.s8 %v1869
        %v1871 = vlaneseq
        %v1872 = vshrl.u32 %v1871, 7
        %v1873 = vsub.s32 %v1870, %v1872
        %v1874 = vrot.slane %v1860, %v1873
        %v1875 = vcombine.high %v1851, 0.0
        %v1876 = vcombine.high %v1858, 0.0
        %v1877 = vcombine.high %v1867, 0.0
        %v1878 = vcombine.high %v1874, 0.0
        %v1879 = vcombine.low %v1785, %v1809
        %v1881 = vunpack.c.l.s4 1983009808
        %v1882 = vunpack.c.0.s8 %v1881
        %v1883 = vlaneseq
        %v1884 = vshrl.u32 %v1883, 7
        %v1885 = vsub.s32 %v1882, %v1884
        %v1886 = vrot.slane %v1879, %v1885
        %v1887 = vcombine.low %v1851, %v1875
        %v1889 = vunpack.c.l.s4 1983009808
        %v1890 = vunpack.c.0.s8 %v1889
        %v1891 = vlaneseq
        %v1892 = vshrl.u32 %v1891, 7
        %v1893 = vsub.s32 %v1890, %v1892
        %v1894 = vrot.slane %v1887, %v1893
        %v1895 = vcombine.low %v1792, %v1810
        %v1897 = vunpack.c.l.s4 1983009808
        %v1898 = vunpack.c.0.s8 %v1897
        %v1899 = vlaneseq
        %v1900 = vshrl.u32 %v1899, 7
        %v1901 = vsub.s32 %v1898, %v1900
        %v1902 = vrot.slane %v1895, %v1901
        %v1903 = vcombine.low %v1858, %v1876
        %v1905 = vunpack.c.l.s4 1983009808
        %v1906 = vunpack.c.0.s8 %v1905
        %v1907 = vlaneseq
        %v1908 = vshrl.u32 %v1907, 7
        %v1909 = vsub.s32 %v1906, %v1908
        %v1910 = vrot.slane %v1903, %v1909
        %v1911 = vcombine.low %v1886, %v1894
        %v1913 = vunpack.c.l.s4 1934713408
        %v1914 = vunpack.c.0.s8 %v1913
        %v1915 = vlaneseq
        %v1916 = vshrl.u32 %v1915, 7
        %v1917 = vsub.s32 %v1914, %v1916
        %v1918 = vrot.slane %v1911, %v1917
        %v1919 = vcombine.low %v1902, %v1910
        %v1921 = vunpack.c.l.s4 1934713408
        %v1922 = vunpack.c.0.s8 %v1921
        %v1923 = vlaneseq
        %v1924 = vshrl.u32 %v1923, 7
        %v1925 = vsub.s32 %v1922, %v1924
        %v1926 = vrot.slane %v1919, %v1925
        %v1927 = vcombine.low %v1918, %v1926
        %v1928 = vcombine.high %v1918, %v1926
        %v1929 = vcombine.low %v1801, %v1811
        %v1931 = vunpack.c.l.s4 1983009808
        %v1932 = vunpack.c.0.s8 %v1931
        %v1933 = vlaneseq
        %v1934 = vshrl.u32 %v1933, 7
        %v1935 = vsub.s32 %v1932, %v1934
        %v1936 = vrot.slane %v1929, %v1935
        %v1937 = vcombine.low %v1867, %v1877
        %v1939 = vunpack.c.l.s4 1983009808
        %v1940 = vunpack.c.0.s8 %v1939
        %v1941 = vlaneseq
        %v1942 = vshrl.u32 %v1941, 7
        %v1943 = vsub.s32 %v1940, %v1942
        %v1944 = vrot.slane %v1937, %v1943
        %v1945 = vcombine.low %v1808, %v1812
        %v1947 = vunpack.c.l.s4 1983009808
        %v1948 = vunpack.c.0.s8 %v1947
        %v1949 = vlaneseq
        %v1950 = vshrl.u32 %v1949, 7
        %v1951 = vsub.s32 %v1948, %v1950
        %v1952 = vrot.slane %v1945, %v1951
        %v1953 = vcombine.low %v1874, %v1878
        %v1955 = vunpack.c.l.s4 1983009808
        %v1956 = vunpack.c.0.s8 %v1955
        %v1957 = vlaneseq
        %v1958 = vshrl.u32 %v1957, 7
        %v1959 = vsub.s32 %v1956, %v1958
        %v1960 = vrot.slane %v1953, %v1959
        %v1961 = vcombine.low %v1936, %v1944
        %v1963 = vunpack.c.l.s4 1934713408
        %v1964 = vunpack.c.0.s8 %v1963
        %v1965 = vlaneseq
        %v1966 = vshrl.u32 %v1965, 7
        %v1967 = vsub.s32 %v1964, %v1966
        %v1968 = vrot.slane %v1961, %v1967
        %v1969 = vcombine.low %v1952, %v1960
        %v1971 = vunpack.c.l.s4 1934713408
        %v1972 = vunpack.c.0.s8 %v1971
        %v1973 = vlaneseq
        %v1974 = vshrl.u32 %v1973, 7
        %v1975 = vsub.s32 %v1972, %v1974
        %v1976 = vrot.slane %v1969, %v1975
        %v1977 = vcombine.low %v1968, %v1976
        %v1978 = vcombine.high %v1968, %v1976
        %1981 = vrot.lane.b32.xlu0 %v1928, 16
        %v1982 = vpop.permute.xlu0 %1981
        %1983 = vrot.lane.b32.xlu0 %v1978, 16
        %v1984 = vpop.permute.xlu0 %1983
        %v1987 = vsel %vm1320, %v1927, %v1982
        %v1988 = vsel %vm1320, %v1977, %v1984
        %v1989 = vpack.c.bf16 %v1988, %v1987
        %v1991 = vlaneseq
        %v1992 = vshrl.u32 %v1991, 7
        %v1993 = vsub.s32 0, %v1992
        %v1994 = vrot.slane %v687, %v1993
        %v2000 = vunpack.c.l.b16 %v683
        %v2001 = vunpack.c.l.b16 %v684
        %v2002 = vunpack.c.l.b16 %v685
        %v2003 = vunpack.c.l.b16 %v686
        %v2004 = vpack.c.b16 %v2001, %v2000
        %v2005 = vpack.c.b16 %v2003, %v2002
        %v2009 = vsel %vm727, %v1989, 0
        %2011 = vmatprep.subr.bf16.mxu0 0
        %2012 = vmatpush1.bf16.msra.mxu0 %v2004
        %2013 = vmatprep.subr.bf16.mxu0 0
        %2014 = vmatpush1.bf16.msra.mxu0 %v2005
        %2015 = vmatprep.subr.bf16.mxu0 0
        %2016 = vmatpush1.bf16.msra.mxu0 0
        %2017 = vmatprep.subr.bf16.mxu0 0
        %2018 = vmatpush1.bf16.msra.mxu0 0
        %2019 = vmatprep.subr.bf16.mxu0 0
        %2020 = vmatpush1.bf16.msra.mxu0 0
        %2021 = vmatprep.subr.bf16.mxu0 0
        %2022 = vmatpush1.bf16.msra.mxu0 0
        %2023 = vmatprep.subr.bf16.mxu0 0
        %2024 = vmatpush1.bf16.msra.mxu0 0
        %2025 = vmatprep.subr.bf16.mxu0 0
        %2026 = vmatpush1.bf16.msra.mxu0 0
        %2027 = vmatprep.subr.bf16.mxu0 0
        %2028 = vmatpush1.bf16.msra.mxu0 0
        %2029 = vmatprep.subr.bf16.mxu0 0
        %2030 = vmatpush1.bf16.msra.mxu0 0
        %2031 = vmatprep.subr.bf16.mxu0 0
        %2032 = vmatpush1.bf16.msra.mxu0 0
        %2033 = vmatprep.subr.bf16.mxu0 0
        %2034 = vmatpush1.bf16.msra.mxu0 0
        %2035 = vmatprep.subr.bf16.mxu0 0
        %2036 = vmatpush1.bf16.msra.mxu0 0
        %2037 = vmatprep.subr.bf16.mxu0 0
        %2038 = vmatpush1.bf16.msra.mxu0 0
        %2039 = vmatprep.subr.bf16.mxu0 0
        %2040 = vmatpush1.bf16.msra.mxu0 0
        %2041 = vmatprep.subr.bf16.mxu0 0
        %2042 = vmatpush1.bf16.msra.mxu0 0
        %2043 = vmatprep.mubr.bf16.mxu0 0
        %2044 = vmatmul.mubr.bf16.gmra.mrb[0].mxu0 %v2009
        %v2045 = vpop.f32.mrb[0].mxu0
        %v2046 = vadd.f32 %v1994, %v2045
        %v2047 = vpop.f32.mrb[0].mxu0
        %v2048 = vpop.f32.mrb[0].mxu0
        %v2049 = vadd.f32 %v1994, %v2048
        %v2050 = vpop.f32.mrb[0].mxu0
        %2051 = vdwg.mxu0
        %v2052 = vadd.f32 %v706, %v2046
        %v2053 = vadd.f32 %v707, %v2049
        %v2054 = vsel %vm727, %v2052, 0.0
        %2055 = vadd.xlane.f32.xlu0 %v2054
        %v2056 = vpop.xlane.xlu0 %2055
        %v2057 = vsel %vm727, %v2053, 0.0
        %2058 = vadd.xlane.f32.xlu0 %v2057
        %v2059 = vpop.xlane.xlu0 %2058
        %v2060 = vrcp.pop 32.0
        %v2061 = vmul.f32 %v2056, %v2060
        %v2062 = vmul.f32 %v2059, %v2060
        %v2063 = vsub.f32 %v2052, %v2061
        %v2064 = vsub.f32 %v2053, %v2062
        %v2065 = vmul.f32 %v2063, %v2063
        %v2066 = vmul.f32 %v2064, %v2064
        %v2067 = vsel %vm727, %v2065, 0.0
        %2068 = vadd.xlane.f32.xlu0 %v2067
        %v2069 = vpop.xlane.xlu0 %2068
        %v2070 = vsel %vm727, %v2066, 0.0
        %2071 = vadd.xlane.f32.xlu0 %v2070
        %v2072 = vpop.xlane.xlu0 %2071
        %v2073 = vmul.f32 %v2069, %v2060
        %v2074 = vmul.f32 %v2072, %v2060
        %v2075 = vadd.f32 %v2073, 1e-05
        %v2076 = vadd.f32 %v2074, 1e-05
        %v2077 = vrsqrt.pop %v2075
        %v2078 = vrsqrt.pop %v2076
        %v2079 = vmul.f32 %v2063, %v2077
        %v2080 = vmul.f32 %v2064, %v2078
        %v2082 = vlaneseq
        %v2083 = vshrl.u32 %v2082, 7
        %v2084 = vsub.s32 0, %v2083
        %v2085 = vrot.slane %v702, %v2084
        %v2087 = vmul.f32 %v2079, %v2085
        %v2088 = vmul.f32 %v2080, %v2085
        %v2090 = vlaneseq
        %v2091 = vshrl.u32 %v2090, 7
        %v2092 = vsub.s32 0, %v2091
        %v2093 = vrot.slane %v703, %v2092
        %v2095 = vadd.f32 %v2087, %v2093
        %v2096 = vadd.f32 %v2088, %v2093
        %v2097 = vpack.c.bf16 %v2096, %v2095
        %v2099 = vlaneseq
        %v2100 = vshrl.u32 %v2099, 7
        %v2101 = vsub.s32 0, %v2100
        %v2102 = vrot.slane %v692, %v2101
        %v2108 = vunpack.c.l.b16 %v688
        %v2109 = vunpack.c.l.b16 %v689
        %v2110 = vunpack.c.l.b16 %v690
        %v2111 = vunpack.c.l.b16 %v691
        %v2112 = vpack.c.b16 %v2109, %v2108
        %v2113 = vpack.c.b16 %v2111, %v2110
        %v2117 = vsel %vm727, %v2097, 0
        %2119 = vmatprep.subr.bf16.mxu0 0
        %2120 = vmatpush1.bf16.msra.mxu0 %v2112
        %2121 = vmatprep.subr.bf16.mxu0 0
        %2122 = vmatpush1.bf16.msra.mxu0 %v2113
        %2123 = vmatprep.subr.bf16.mxu0 0
        %2124 = vmatpush1.bf16.msra.mxu0 0
        %2125 = vmatprep.subr.bf16.mxu0 0
        %2126 = vmatpush1.bf16.msra.mxu0 0
        %2127 = vmatprep.subr.bf16.mxu0 0
        %2128 = vmatpush1.bf16.msra.mxu0 0
        %2129 = vmatprep.subr.bf16.mxu0 0
        %2130 = vmatpush1.bf16.msra.mxu0 0
        %2131 = vmatprep.subr.bf16.mxu0 0
        %2132 = vmatpush1.bf16.msra.mxu0 0
        %2133 = vmatprep.subr.bf16.mxu0 0
        %2134 = vmatpush1.bf16.msra.mxu0 0
        %2135 = vmatprep.subr.bf16.mxu0 0
        %2136 = vmatpush1.bf16.msra.mxu0 0
        %2137 = vmatprep.subr.bf16.mxu0 0
        %2138 = vmatpush1.bf16.msra.mxu0 0
        %2139 = vmatprep.subr.bf16.mxu0 0
        %2140 = vmatpush1.bf16.msra.mxu0 0
        %2141 = vmatprep.subr.bf16.mxu0 0
        %2142 = vmatpush1.bf16.msra.mxu0 0
        %2143 = vmatprep.subr.bf16.mxu0 0
        %2144 = vmatpush1.bf16.msra.mxu0 0
        %2145 = vmatprep.subr.bf16.mxu0 0
        %2146 = vmatpush1.bf16.msra.mxu0 0
        %2147 = vmatprep.subr.bf16.mxu0 0
        %2148 = vmatpush1.bf16.msra.mxu0 0
        %2149 = vmatprep.subr.bf16.mxu0 0
        %2150 = vmatpush1.bf16.msra.mxu0 0
        %2151 = vmatprep.mubr.bf16.mxu0 0
        %2152 = vmatmul.mubr.bf16.gmra.mrb[0].mxu0 %v2117
        %v2153 = vpop.f32.mrb[0].mxu0
        %v2154 = vadd.f32 %v2102, %v2153
        %v2155 = vpop.f32.mrb[0].mxu0
        %v2156 = vpop.f32.mrb[0].mxu0
        %v2157 = vadd.f32 %v2102, %v2156
        %v2158 = vpop.f32.mrb[0].mxu0
        %2159 = vdwg.mxu0
        %v2160 = vmax.f32 %v2154, 0.0
        %v2161 = vmax.f32 %v2157, 0.0
        %v2162 = vpack.c.bf16 %v2161, %v2160
        %v2164 = vlaneseq
        %v2165 = vshrl.u32 %v2164, 7
        %v2166 = vsub.s32 0, %v2165
        %v2167 = vrot.slane %v701, %v2166
        %v2177 = vunpack.c.l.b16 %v693
        %v2178 = vunpack.c.l.b16 %v694
        %v2179 = vunpack.c.l.b16 %v695
        %v2180 = vunpack.c.l.b16 %v696
        %v2181 = vunpack.c.l.b16 %v697
        %v2182 = vunpack.c.l.b16 %v698
        %v2183 = vunpack.c.l.b16 %v699
        %v2184 = vunpack.c.l.b16 %v700
        %v2185 = vpack.c.b16 %v2178, %v2177
        %v2186 = vpack.c.b16 %v2180, %v2179
        %v2187 = vpack.c.b16 %v2182, %v2181
        %v2188 = vpack.c.b16 %v2184, %v2183
        %vm2193 = vcmask 523264
        %v2195 = vsel %vm2193, %v2162, 0
        %2197 = vmatprep.subr.bf16.mxu0 0
        %2198 = vmatpush1.bf16.msra.mxu0 %v2185
        %2199 = vmatprep.subr.bf16.mxu0 0
        %2200 = vmatpush1.bf16.msra.mxu0 %v2186
        %2201 = vmatprep.subr.bf16.mxu0 0
        %2202 = vmatpush1.bf16.msra.mxu0 %v2187
        %2203 = vmatprep.subr.bf16.mxu0 0
        %2204 = vmatpush1.bf16.msra.mxu0 %v2188
        %2205 = vmatprep.subr.bf16.mxu0 0
        %2206 = vmatpush1.bf16.msra.mxu0 0
        %2207 = vmatprep.subr.bf16.mxu0 0
        %2208 = vmatpush1.bf16.msra.mxu0 0
        %2209 = vmatprep.subr.bf16.mxu0 0
        %2210 = vmatpush1.bf16.msra.mxu0 0
        %2211 = vmatprep.subr.bf16.mxu0 0
        %2212 = vmatpush1.bf16.msra.mxu0 0
        %2213 = vmatprep.subr.bf16.mxu0 0
        %2214 = vmatpush1.bf16.msra.mxu0 0
        %2215 = vmatprep.subr.bf16.mxu0 0
        %2216 = vmatpush1.bf16.msra.mxu0 0
        %2217 = vmatprep.subr.bf16.mxu0 0
        %2218 = vmatpush1.bf16.msra.mxu0 0
        %2219 = vmatprep.subr.bf16.mxu0 0
        %2220 = vmatpush1.bf16.msra.mxu0 0
        %2221 = vmatprep.subr.bf16.mxu0 0
        %2222 = vmatpush1.bf16.msra.mxu0 0
        %2223 = vmatprep.subr.bf16.mxu0 0
        %2224 = vmatpush1.bf16.msra.mxu0 0
        %2225 = vmatprep.subr.bf16.mxu0 0
        %2226 = vmatpush1.bf16.msra.mxu0 0
        %2227 = vmatprep.subr.bf16.mxu0 0
        %2228 = vmatpush1.bf16.msra.mxu0 0
        %2229 = vmatprep.mubr.bf16.mxu0 0
        %2230 = vmatmul.mubr.bf16.gmra.mrb[0].mxu0 %v2195
        %v2231 = vpop.f32.mrb[0].mxu0
        %v2232 = vadd.f32 %v2167, %v2231
        %v2233 = vpop.f32.mrb[0].mxu0
        %v2234 = vpop.f32.mrb[0].mxu0
        %v2235 = vadd.f32 %v2167, %v2234
        %v2236 = vpop.f32.mrb[0].mxu0
        %2237 = vdwg.mxu0
        %v2238 = vadd.f32 %v2095, %v2232
        %v2239 = vadd.f32 %v2096, %v2235
        %v2240 = vsel %vm727, %v2238, 0.0
        %2241 = vadd.xlane.f32.xlu0 %v2240
        %v2242 = vpop.xlane.xlu0 %2241
        %v2243 = vsel %vm727, %v2239, 0.0
        %2244 = vadd.xlane.f32.xlu0 %v2243
        %v2245 = vpop.xlane.xlu0 %2244
        %v2246 = vmul.f32 %v2242, %v2060
        %v2247 = vmul.f32 %v2245, %v2060
        %v2248 = vsub.f32 %v2238, %v2246
        %v2249 = vsub.f32 %v2239, %v2247
        %v2250 = vmul.f32 %v2248, %v2248
        %v2251 = vmul.f32 %v2249, %v2249
        %v2252 = vsel %vm727, %v2250, 0.0
        %2253 = vadd.xlane.f32.xlu0 %v2252
        %v2254 = vpop.xlane.xlu0 %2253
        %v2255 = vsel %vm727, %v2251, 0.0
        %2256 = vadd.xlane.f32.xlu0 %v2255
        %v2257 = vpop.xlane.xlu0 %2256
        %v2258 = vmul.f32 %v2254, %v2060
        %v2259 = vmul.f32 %v2257, %v2060
        %v2260 = vadd.f32 %v2258, 1e-05
        %v2261 = vadd.f32 %v2259, 1e-05
        %v2262 = vrsqrt.pop %v2260
        %v2263 = vrsqrt.pop %v2261
        %v2264 = vmul.f32 %v2248, %v2262
        %v2265 = vmul.f32 %v2249, %v2263
        %v2267 = vlaneseq
        %v2268 = vshrl.u32 %v2267, 7
        %v2269 = vsub.s32 0, %v2268
        %v2270 = vrot.slane %v704, %v2269
        %v2272 = vmul.f32 %v2264, %v2270
        %v2273 = vmul.f32 %v2265, %v2270
        %v2275 = vlaneseq
        %v2276 = vshrl.u32 %v2275, 7
        %v2277 = vsub.s32 0, %v2276
        %v2278 = vrot.slane %v705, %v2277
        %v2280 = vadd.f32 %v2272, %v2278
        %v2281 = vadd.f32 %v2273, %v2278
        %2282 = vst.msk [vmem:[#allocation2] sm:$0xff] %vm727, %v2280
        %2283 = vst.msk [vmem:[#allocation2 + $0x8] sm:$0xff] %vm727, %v2281
        %p2284 = scmp.eq.s32.totalorder %s28, 1
        // Predicated region
        $region89: #{tpu_custom_call.1} parent=75 // pred_check
          %p2285 = pneg %p2284
        $region90: #{tpu_custom_call.1} parent=75 // pred_check_branch
          %2287 = sbr.rel (%p2285) target = $region92
        $region91: #{tpu_custom_call.1} parent=75 // pred_region
          %v2288 = vld [vmem:[#allocation2] sm:$0xff]
          %v2289 = vld [vmem:[#allocation2 + $0x8] sm:$0xff]
          %2290 = vst.msk [vmem:[#allocation8] sm:$0xff] %vm727, %v2288
          %2291 = vst.msk [vmem:[#allocation8 + $0x8] sm:$0xff] %vm727, %v2289
        $region92: #{tpu_custom_call.1} parent=75 // pred_fallthru
          _
        // Predicated region
        $region93: #{tpu_custom_call.1} parent=75 // pred_check
          %p2292 = pneg %p395
        $region94: #{tpu_custom_call.1} parent=75 // pred_check_branch
          %2294 = sbr.rel (%p2292) target = $region96
        $region95: #{tpu_custom_call.1} parent=75 // pred_region
          %s2296 = ssub.s32 256, 256
          %2297 = vsyncadd [#allocation5], %s2296
          %s2298 = sshll.u32 [#allocation8], 4
          %s2299 = int_to_ptr.vmem [resolvable:$true] %s2298
          %2304 = dma.vmem_to_hbm [thread:$0]  %s2299, 256, %s14, [#allocation5], 128, 128, 8
        $region96: #{tpu_custom_call.1} parent=75 // pred_fallthru
          _
        // Predicated region
        $region97: #{tpu_custom_call.1} parent=75 // pred_check
          %p2305 = pneg %p395
        $region98: #{tpu_custom_call.1} parent=75 // pred_check_branch
          %2307 = sbr.rel (%p2305) target = $region100
        $region99: #{tpu_custom_call.1} parent=75 // pred_region
          %2308 = dma.done [#allocation5], 256
        $region100: #{tpu_custom_call.1} parent=75 // pred_fallthru
          _
      $region76: #{tpu_custom_call.1} parent=5 // pred_fallthru
        _
      %p2309 = scmp.le.s32.totalorder 2, %s23
      // Predicated region
      $region101: #{tpu_custom_call.1} parent=5 // pred_check
        %p2310 = pneg %p2309
      $region102: #{tpu_custom_call.1} parent=5 // pred_check_branch
        %2312 = sbr.rel (%p2310) target = $region104
      $region103: #{tpu_custom_call.1} parent=5 // pred_region
        %s2313 = ssub.s32 %s23, 2
      $region104: #{tpu_custom_call.1} parent=5 // pred_fallthru
        _
    $region6: #{tpu_custom_call.1} parent=1 // loop_footer
      %s27 = sadd.s32 1, %s23
    $region7: #{tpu_custom_call.1} parent=1 // loop_footer_branch
      %22 = sbr.rel target = $region3
    $region8: #{tpu_custom_call.1} parent=1 // loop_exit
      _
    %2314 = vsyncpa [#allocation4], 1
    %s2315 = scalar_lea.sflag [#allocation4], 1
    %2316 = vsyncpa %s2315, 1
    %2317 = vsyncpa [#allocation7], 1
    %2318 = vsyncpa [#allocation5], 1
    %s2319 = scalar_lea.sflag [#allocation5], 1
    %2320 = vsyncpa %s2319, 1

</llo_original>
